<compile_context>
chip_gen: v7x
topology: tpu7x:2x2x1
jax: 0.10.0
libtpu: 0.0.40
codegen_flags: <defaults>
</compile_context>

<pallas_src>
import functools

import jax
import jax.numpy as jnp
from jax.experimental import pallas as pl
from jax.experimental.pallas import tpu as pltpu


def _round_up(n, m):
    return ((n + m - 1) // m) * m


def _choose_batch_tile(batch, block_b=256, min_tiles=2):
    """Pick a sublane-clean batch tile.

    Aims for >= `min_tiles` tiles (so dimension_semantics=("parallel",) can
    shard across v7x's 2 TensorCores) while capping the tile at `block_b`.
    On single-TC chips (v5e/v6e) the extra tile only costs ~0.35 us of
    grid-step overhead; pass min_tiles=1 there if that matters.
    Tiles are multiples of 16 so both f32 (8-row) and bf16 (16-row) sublane
    packing stay clean.
    """
    b16 = _round_up(batch, 16)
    if b16 <= 16 * min_tiles:          # too small to split usefully
        return b16
    tb = _round_up(pl.cdiv(b16, min_tiles), 16)
    return min(_round_up(block_b, 16), tb)


def generator_kernel(x_ref, w1_ref, b1_ref, w2_ref, b2_ref, o_ref):
    """Fused Linear -> LeakyReLU(0.2) -> Dropout(identity) -> Linear.

    The MXU is always fed bf16 (no TPU generation here has a native f32 MXU);
    accumulation, bias-add and the LeakyReLU epilogue stay in f32.
    """
    x = x_ref[...]
    if x.dtype != jnp.bfloat16:                 # never run the MXU in f32
        x = x.astype(jnp.bfloat16)
    w1 = w1_ref[...]
    if w1.dtype != jnp.bfloat16:
        w1 = w1.astype(jnp.bfloat16)
    # ---- Linear 1 (MXU), f32 accumulation ----
    h = jnp.dot(x, w1, preferred_element_type=jnp.float32)       # (TB, H_p)
    h = h + b1_ref[...].astype(jnp.float32)                      # bias kept f32
    # ---- LeakyReLU(0.2) in f32 on the VPU ----
    h = jnp.where(h > 0, h, 0.2 * h)
    # ---- Dropout(0.1): identity (inference semantics) ----
    # TODO(synk): training-mode dropout via pltpu.prng_seed/prng_random_bits.
    # ---- Linear 2 (MXU): cast only at the MXU boundary ----
    w2 = w2_ref[...]
    if w2.dtype != jnp.bfloat16:
        w2 = w2.astype(jnp.bfloat16)
    y = jnp.dot(h.astype(jnp.bfloat16), w2, preferred_element_type=jnp.float32)
    y = y + b2_ref[...].astype(jnp.float32)
    o_ref[...] = y.astype(o_ref.dtype)


def pad_generator_params(w1, b1, w2, b2, *, weight_dtype=jnp.bfloat16):
    """One-time (init-time) parameter packing.

    Feature dims are zero-padded to multiples of 128 (lane-dense, full MXU
    tiles, unmasked stores); weights are stored bf16 by default (halves HBM
    traffic and hits the native bf16 MXU path on every generation); biases
    stay f32 (negligible bytes, avoids an unnecessary rounding).
    Zero-padded lanes/rows propagate exact zeros through matmul + LeakyReLU,
    so valid-region results are unchanged.
    """
    In, H = w1.shape
    _, O = w2.shape
    In_p, H_p, O_p = _round_up(In, 128), _round_up(H, 128), _round_up(O, 128)
    w1p = jnp.zeros((In_p, H_p), weight_dtype).at[:In, :H].set(w1.astype(weight_dtype))
    b1p = jnp.zeros((1, H_p), jnp.float32).at[:, :H].set(
        b1.reshape(1, H).astype(jnp.float32))
    w2p = jnp.zeros((H_p, O_p), weight_dtype).at[:H, :O].set(w2.astype(weight_dtype))
    b2p = jnp.zeros((1, O_p), jnp.float32).at[:, :O].set(
        b2.reshape(1, O).astype(jnp.float32))
    return w1p, b1p, w2p, b2p


def pad_generator_input(x, in_features_padded, *, block_b=256, min_batch_tiles=2):
    """One-time activation padding/cast: (B, In) -> (B_p, In_p) bf16.

    Doing this once at data-prep time (instead of inside every forward call)
    removes a per-call XLA pad op and its extra HBM round trip.
    """
    B, In = x.shape
    TB = _choose_batch_tile(B, block_b, min_batch_tiles)
    B_p = _round_up(B, TB)
    return (jnp.zeros((B_p, in_features_padded), jnp.bfloat16)
            .at[:B, :In].set(x.astype(jnp.bfloat16)))


@functools.partial(
    jax.jit,
    static_argnames=("out_features", "batch", "block_b", "min_batch_tiles",
                     "training"))
def generator_forward(x, w1p, b1p, w2p, b2p, *, out_features, batch=None,
                      block_b=256, min_batch_tiles=2, training=False):
    if training:
        # TODO(synk): stochastic dropout (pltpu.prng_*) for training mode.
        raise NotImplementedError(
            "Generator kernel implements Dropout(0.1) with eval/inference "
            "semantics only.")

    B_in, In_in = x.shape
    B = B_in if batch is None else batch
    In_p, H_p = w1p.shape
    H_p2, O_p = w2p.shape
    assert H_p2 == H_p, "w1/w2 hidden dims disagree"

    TB = _choose_batch_tile(B_in, block_b, min_batch_tiles)
    B_p = _round_up(B_in, TB)
    out_dtype = x.dtype

    # Fast path: caller pre-padded x once via pad_generator_input() -> no
    # per-call pad op.  Fallback keeps un-prepped f32 callers correct.
    if (B_in, In_in) == (B_p, In_p) and x.dtype == jnp.bfloat16:
        x_p = x
    else:
        x_p = (jnp.zeros((B_p, In_p), jnp.bfloat16)
               .at[:B_in, :In_in].set(x.astype(jnp.bfloat16)))

    # ---- VMEM accounting / v7x guard (64 MiB physical, 32 MiB scoped) ----
    def _isz(dt):
        return jnp.dtype(dt).itemsize

    resident_bytes = (In_p * H_p * _isz(w1p.dtype) + H_p * O_p * _isz(w2p.dtype)
                      + H_p * _isz(b1p.dtype) + O_p * _isz(b2p.dtype))
    streamed_bytes = 2 * TB * In_p * _isz(jnp.bfloat16) + 2 * TB * O_p * _isz(out_dtype)
    hidden_bytes = TB * H_p * 4                       # f32 intermediate
    # Resident blocks are double-buffered by the default pipeline; count x2.
    # TODO(synk): pipeline_mode=pl.Buffered(1) on the resident specs (or tile
    # the weights over K/N) before resident_bytes approaches this guard.
    vmem_needed = 2 * resident_bytes + streamed_bytes + hidden_bytes
    if vmem_needed > 48 * 1024 * 1024:
        raise ValueError(
            f"Weight-resident Generator kernel needs ~{vmem_needed / 2**20:.1f}"
            " MiB VMEM which will not fit on v7x (64 MiB physical); tile the "
            "weights over the hidden/output dims instead of keeping them "
            "resident.")
    vmem_limit = int(min(max(2 * vmem_needed, 32 * 1024 * 1024),
                         56 * 1024 * 1024))

    # ---- Cost hint for XLA scheduling around this small, HBM-bound call ----
    flops = 2 * B_p * (In_p * H_p + H_p * O_p)
    bytes_accessed = (B_p * In_p * _isz(x_p.dtype)
                      + In_p * H_p * _isz(w1p.dtype)
                      + H_p * O_p * _isz(w2p.dtype)
                      + H_p * _isz(b1p.dtype) + O_p * _isz(b2p.dtype)
                      + B_p * O_p * _isz(out_dtype))
    cost = pl.CostEstimate(flops=flops, transcendentals=0,
                           bytes_accessed=bytes_accessed)

    grid = (B_p // TB,)
    out = pl.pallas_call(
        generator_kernel,
        out_shape=jax.ShapeDtypeStruct((B_p, O_p), out_dtype),
        grid_spec=pltpu.PrefetchScalarGridSpec(
            num_scalar_prefetch=0,
            grid=grid,
            in_specs=[
                pl.BlockSpec((TB, In_p), lambda i: (i, 0)),   # x: streamed over batch
                pl.BlockSpec((In_p, H_p), lambda i: (0, 0)),  # w1: resident (const index)
                pl.BlockSpec((1, H_p), lambda i: (0, 0)),     # b1: resident, f32
                pl.BlockSpec((H_p, O_p), lambda i: (0, 0)),   # w2: resident (const index)
                pl.BlockSpec((1, O_p), lambda i: (0, 0)),     # b2: resident, f32
            ],
            out_specs=pl.BlockSpec((TB, O_p), lambda i: (i, 0)),
        ),
        compiler_params=pltpu.CompilerParams(
            dimension_semantics=("parallel",),      # batch tiles are independent
            vmem_limit_bytes=vmem_limit),
        cost_estimate=cost,
    )(x_p, w1p, b1p, w2p, b2p)

    return out[:B, :out_features]


def reference_forward(x, w1, b1, w2, b2):
    h = x @ w1 + b1
    h = jnp.where(h > 0, h, 0.2 * h)
    return h @ w2 + b2


if __name__ == "__main__":
    # Module defaults: input_size=100, output_size=512, hidden_size=512.
    # Small batch keeps the example quick; feature dims follow the module.
    batch, input_size, hidden_size, output_size = 64, 100, 512, 512

    key = jax.random.PRNGKey(0)
    k_x, k_w1, k_b1, k_w2, k_b2 = jax.random.split(key, 5)

    # Deterministic parameter init (matches PyTorch Linear fan-in scaling).
    lim1 = 1.0 / (input_size ** 0.5)
    lim2 = 1.0 / (hidden_size ** 0.5)
    x = jax.random.normal(k_x, (batch, input_size), dtype=jnp.float32)
    w1 = jax.random.uniform(k_w1, (input_size, hidden_size), jnp.float32, -lim1, lim1)
    b1 = jax.random.uniform(k_b1, (hidden_size,), jnp.float32, -lim1, lim1)
    w2 = jax.random.uniform(k_w2, (hidden_size, output_size), jnp.float32, -lim2, lim2)
    b2 = jax.random.uniform(k_b2, (output_size,), jnp.float32, -lim2, lim2)

    # One-time packing: bf16 weights, f32 biases, 128-padded features; x is
    # padded + cast to bf16 once so the forward has no per-call pad op.
    w1p, b1p, w2p, b2p = pad_generator_params(w1, b1, w2, b2)
    x_p = pad_generator_input(x, w1p.shape[0])

    ref = reference_forward(x, w1, b1, w2, b2)

    # ---- Default bf16 path (pre-padded activations, bf16 output) ----
    out = generator_forward(x_p, w1p, b1p, w2p, b2p,
                            out_features=output_size, batch=batch)
    out = jax.block_until_ready(out)
    assert out.shape == (batch, output_size)
    err = float(jnp.max(jnp.abs(out.astype(jnp.float32) - ref)))
    assert err < 0.1, f"bf16 path error too large: {err}"

    # ---- f32-caller fallback (un-padded f32 x): MXU is still fed bf16 ----
    out32 = generator_forward(x, w1p, b1p, w2p, b2p, out_features=output_size)
    out32 = jax.block_until_ready(out32)
    assert out32.shape == (batch, output_size)
    assert out32.dtype == jnp.float32
    err32 = float(jnp.max(jnp.abs(out32 - ref)))
    assert err32 < 0.1, f"f32-caller path error too large: {err32}"

    print("KERNEL_OK")
</pallas_src>

<mosaic_0001>
module attributes {stable_mosaic.version = 11 : i64} {
  func.func @generator_kernel(%arg0: i32, %arg1: memref<32x128xbf16, #tpu.memory_space<vmem>>, %arg2: memref<128x512xbf16, #tpu.memory_space<vmem>>, %arg3: memref<1x512xf32, #tpu.memory_space<vmem>>, %arg4: memref<512x512xbf16, #tpu.memory_space<vmem>>, %arg5: memref<1x512xf32, #tpu.memory_space<vmem>>, %arg6: memref<32x512xbf16, #tpu.memory_space<vmem>>) attributes {dimension_semantics = [#tpu.dimension_semantics<parallel>], iteration_bounds = array<i64: 2>, scalar_prefetch = 0 : i64, scratch_operands = 0 : i64, tpu.core_type = #tpu.core_type<tc>, window_params = [{transform_indices = @transform_0, window_bounds = array<i64: 32, 128>}, {pipeline_mode = #tpu.pipeline_mode<synchronous>, transform_indices = @transform_1, window_bounds = array<i64: 128, 512>}, {pipeline_mode = #tpu.pipeline_mode<synchronous>, transform_indices = @transform_2, window_bounds = array<i64: 1, 512>}, {pipeline_mode = #tpu.pipeline_mode<synchronous>, transform_indices = @transform_3, window_bounds = array<i64: 512, 512>}, {pipeline_mode = #tpu.pipeline_mode<synchronous>, transform_indices = @transform_4, window_bounds = array<i64: 1, 512>}, {transform_indices = @transform_5, window_bounds = array<i64: 32, 512>}]} {
    %c0 = arith.constant 0 : index
    %c0_0 = arith.constant 0 : index
    %0 = vector.load %arg1[%c0, %c0_0] : memref<32x128xbf16, #tpu.memory_space<vmem>>, vector<32x128xbf16>
    %c0_1 = arith.constant 0 : index
    %c0_2 = arith.constant 0 : index
    %1 = vector.load %arg2[%c0_1, %c0_2] : memref<128x512xbf16, #tpu.memory_space<vmem>>, vector<128x512xbf16>
    %cst = arith.constant dense<0.000000e+00> : vector<32x512xf32>
    %2 = tpu.matmul %0, %1, %cst {dimension_numbers = #tpu.dot_dimension_numbers<[1], [0], [0], [1], [0, 0, 1, 1], [], []>} : vector<32x128xbf16>, vector<128x512xbf16>, vector<32x512xf32> -> vector<32x512xf32>
    %c0_3 = arith.constant 0 : index
    %c0_4 = arith.constant 0 : index
    %3 = vector.load %arg3[%c0_3, %c0_4] : memref<1x512xf32, #tpu.memory_space<vmem>>, vector<1x512xf32>
    %4 = vector.broadcast %3 : vector<1x512xf32> to vector<32x512xf32>
    %5 = arith.addf %2, %4 : vector<32x512xf32>
    %cst_5 = arith.constant 0.000000e+00 : f32
    %6 = vector.broadcast %cst_5 : f32 to vector<32x512xf32>
    %7 = arith.cmpf ogt, %5, %6 : vector<32x512xf32>
    %cst_6 = arith.constant 2.000000e-01 : f32
    %8 = vector.broadcast %cst_6 : f32 to vector<32x512xf32>
    %9 = arith.mulf %8, %5 : vector<32x512xf32>
    %10 = arith.select %7, %5, %9 : vector<32x512xi1>, vector<32x512xf32>
    %c0_7 = arith.constant 0 : index
    %c0_8 = arith.constant 0 : index
    %11 = vector.load %arg4[%c0_7, %c0_8] : memref<512x512xbf16, #tpu.memory_space<vmem>>, vector<512x512xbf16>
    %12 = arith.truncf %10 : vector<32x512xf32> to vector<32x512xbf16>
    %cst_9 = arith.constant dense<0.000000e+00> : vector<32x512xf32>
    %13 = tpu.matmul %12, %11, %cst_9 {dimension_numbers = #tpu.dot_dimension_numbers<[1], [0], [0], [1], [0, 0, 1, 1], [], []>} : vector<32x512xbf16>, vector<512x512xbf16>, vector<32x512xf32> -> vector<32x512xf32>
    %c0_10 = arith.constant 0 : index
    %c0_11 = arith.constant 0 : index
    %14 = vector.load %arg5[%c0_10, %c0_11] : memref<1x512xf32, #tpu.memory_space<vmem>>, vector<1x512xf32>
    %15 = vector.broadcast %14 : vector<1x512xf32> to vector<32x512xf32>
    %16 = arith.addf %13, %15 : vector<32x512xf32>
    %17 = arith.truncf %16 : vector<32x512xf32> to vector<32x512xbf16>
    %c0_12 = arith.constant 0 : index
    %c0_13 = arith.constant 0 : index
    %18 = vector.load %arg6[%c0_12, %c0_13] : memref<32x512xbf16, #tpu.memory_space<vmem>>, vector<32x512xbf16>
    tpu.vector_store %arg6[%c0_12, %c0_13], %17 {strides = array<i32>} : memref<32x512xbf16, #tpu.memory_space<vmem>>, vector<32x512xbf16>,
    return
  }
  func.func @transform_0(%arg0: i32) -> (i32, i32) {
    %c0_i32 = arith.constant 0 : i32
    %c0_i32_0 = arith.constant 0 : i32
    return %arg0, %c0_i32 : i32, i32
  }
  func.func @transform_1(%arg0: i32) -> (i32, i32) {
    %c0_i32 = arith.constant 0 : i32
    %c0_i32_0 = arith.constant 0 : i32
    %c0_i32_1 = arith.constant 0 : i32
    return %c0_i32, %c0_i32_0 : i32, i32
  }
  func.func @transform_2(%arg0: i32) -> (i32, i32) {
    %c0_i32 = arith.constant 0 : i32
    %c0_i32_0 = arith.constant 0 : i32
    %c0_i32_1 = arith.constant 0 : i32
    return %c0_i32, %c0_i32_0 : i32, i32
  }
  func.func @transform_3(%arg0: i32) -> (i32, i32) {
    %c0_i32 = arith.constant 0 : i32
    %c0_i32_0 = arith.constant 0 : i32
    %c0_i32_1 = arith.constant 0 : i32
    return %c0_i32, %c0_i32_0 : i32, i32
  }
  func.func @transform_4(%arg0: i32) -> (i32, i32) {
    %c0_i32 = arith.constant 0 : i32
    %c0_i32_0 = arith.constant 0 : i32
    %c0_i32_1 = arith.constant 0 : i32
    return %c0_i32, %c0_i32_0 : i32, i32
  }
  func.func @transform_5(%arg0: i32) -> (i32, i32) {
    %c0_i32 = arith.constant 0 : i32
    %c0_i32_0 = arith.constant 0 : i32
    return %arg0, %c0_i32 : i32, i32
  }
}

</mosaic_0001>

<llo_original>
// kernel: generator_forward.1
$region0: #{generator_forward.1}
  #allocation0 [shape = 'u32[]', space=smem, size = 0x4, offset = 0x4, fixed_abs, tag = 'smem constant byte address 0x4 - core index']
  #allocation1 [shape = 'u32[144,128]{1,0:T(1,128)}', space=vmem, size = 0x12000, scoped, tag = 'internal scratch']
  %s0 = inlined_call_operand.hbm [shape: bf16[64,128], index: 0, kind: input, shape index: {}]
  %s1 = inlined_call_operand.hbm [shape: bf16[128,512], index: 1, kind: input, shape index: {}]
  %s2 = inlined_call_operand.vmem [shape: f32[1,512], index: 2, kind: input, shape index: {}]
  %s3 = inlined_call_operand.hbm [shape: bf16[512,512], index: 3, kind: input, shape index: {}]
  %s4 = inlined_call_operand.vmem [shape: f32[1,512], index: 4, kind: input, shape index: {}]
  %s5 = inlined_call_operand.hbm [shape: bf16[64,512], index: 5, kind: output, shape index: {}]
  %s6 = sld [smem:[#allocation0]]
  $region65: #{generator_forward.1} parent=0
    _
  %s8 = ssub.s32 1, %s6
  %s9 = scalar_select 0, %s8, %s6
  $region1: #{generator_forward.1} parent=0
    #allocation2 [shape = 'u8[16384]{0}', space=vmem, size = 0x4000, scoped, tag = 'input window, operand 0']
    #allocation3 [shape = 's32[2]{0}', space=sflag, size = 0x8, scoped, tag = 'scoped memory for generator_forward.1']
    #allocation4 [shape = 's32[2]{0}', space=sflag, size = 0x8, scoped, tag = 'scoped memory for generator_forward.1']
    #allocation5 [shape = 'u8[131072]{0}', space=vmem, size = 0x20000, scoped, tag = 'input window, operand 1, single buffered']
    #allocation6 [shape = 's32[1]{0}', space=sflag, size = 0x4, scoped, tag = 'scoped memory for generator_forward.1']
    #allocation7 [shape = 'u8[524288]{0}', space=vmem, size = 0x80000, scoped, tag = 'input window, operand 3, single buffered']
    #allocation8 [shape = 'u8[65536]{0}', space=vmem, size = 0x10000, scoped, tag = 'output window, operand 0']
    %10 = vsyncpa [#allocation3], 0
    %s11 = scalar_lea.sflag [#allocation3], 1
    %12 = vsyncpa %s11, 0
    %13 = vsyncpa [#allocation6], 0
    %14 = vsyncpa [#allocation4], 0
    %s15 = scalar_lea.sflag [#allocation4], 1
    %16 = vsyncpa %s15, 0
    loop: start=0, step=1, limit=4
    $region2: #{generator_forward.1} parent=1 // loop_pre_header
      _
    $region3: #{generator_forward.1} parent=1 // loop_header
      %s18 = sphi 0, %s22
      %p19 = scmp.ge.s32.totalorder %s18, 4
      %s28 = sphi 0, %s30
      %s31 = sphi 0, %s28
      %s32 = sphi 0, %s31
      %s48 = sphi 0, %s32
      %s52 = sphi 0, %s52
      %s54 = sphi 0, %s52
      %s55 = sphi 0, %s54
      %s69 = sphi 0, %s55
      %s73 = sphi 0, %s73
      %s75 = sphi 0, %s73
      %s76 = sphi 0, %s75
      %s90 = sphi 0, %s76
      %s94 = sphi 0, %s94
      %s96 = sphi 0, %s94
      %s97 = sphi 0, %s96
      %s111 = sphi 0, %s97
      %s115 = sphi 0, %s115
      %s117 = sphi 0, %s115
      %s118 = sphi 0, %s117
      %s132 = sphi 0, %s118
      %s138 = sphi 0, %s140
      %s141 = sphi 0, %s138
      %s142 = sphi 0, %s141
      %s158 = sphi 0, %s142
    $region4: #{generator_forward.1} parent=1 // loop_header_branch
      %21 = sbr.rel (%p19) target = $region8
    $region5: #{generator_forward.1} parent=1 // loop_body
      %s23 = ssub.s32 %s18, 1
      %s24 = ssub.s32 %s18, 2
      %s25 = sadd.s32 %s18, 1
      %s26 = ssub.s32 %s18, %s25
      %p27 = scmp.eq.s32.totalorder %s26, 0
      %s29 = sadd.s32 %s28, 1
      %s30 = scalar_select %p27, %s28, %s29
      %p33 = pneg %p27
      %p34 = scmp.eq.s32.totalorder %s18, 1
      %p35 = por %p33, %p34
      %p36 = scmp.ne.s32.totalorder %s28, %s31
      %p37 = scmp.eq.s32.totalorder %s18, 0
      %p38 = por %p36, %p37
      %p39 = scmp.ne.s32.totalorder %s28, %s31
      %p40 = scmp.eq.s32.totalorder %s23, 1
      %p41 = por %p39, %p40
      %p42 = scmp.ne.s32.totalorder %s31, %s32
      %p43 = scmp.eq.s32.totalorder %s23, 0
      %p44 = por %p42, %p43
      %p45 = scmp.ne.s32.totalorder %s31, %s32
      %p46 = scmp.eq.s32.totalorder %s24, 1
      %p47 = por %p45, %p46
      %p49 = scmp.ne.s32.totalorder %s32, %s48
      %p50 = scmp.eq.s32.totalorder %s24, 0
      %p51 = por %p49, %p50
      %s53 = sadd.s32 %s52, 1
      %p56 = scmp.eq.s32.totalorder %s18, 1
      %p57 = scmp.ne.s32.totalorder %s52, %s54
      %p58 = scmp.eq.s32.totalorder %s18, 0
      %p59 = por %p57, %p58
      %p60 = scmp.ne.s32.totalorder %s52, %s54
      %p61 = scmp.eq.s32.totalorder %s23, 1
      %p62 = por %p60, %p61
      %p63 = scmp.ne.s32.totalorder %s54, %s55
      %p64 = scmp.eq.s32.totalorder %s23, 0
      %p65 = por %p63, %p64
      %p66 = scmp.ne.s32.totalorder %s54, %s55
      %p67 = scmp.eq.s32.totalorder %s24, 1
      %p68 = por %p66, %p67
      %p70 = scmp.ne.s32.totalorder %s55, %s69
      %p71 = scmp.eq.s32.totalorder %s24, 0
      %p72 = por %p70, %p71
      %s74 = sadd.s32 %s73, 1
      %p77 = scmp.eq.s32.totalorder %s18, 1
      %p78 = scmp.ne.s32.totalorder %s73, %s75
      %p79 = scmp.eq.s32.totalorder %s18, 0
      %p80 = por %p78, %p79
      %p81 = scmp.ne.s32.totalorder %s73, %s75
      %p82 = scmp.eq.s32.totalorder %s23, 1
      %p83 = por %p81, %p82
      %p84 = scmp.ne.s32.totalorder %s75, %s76
      %p85 = scmp.eq.s32.totalorder %s23, 0
      %p86 = por %p84, %p85
      %p87 = scmp.ne.s32.totalorder %s75, %s76
      %p88 = scmp.eq.s32.totalorder %s24, 1
      %p89 = por %p87, %p88
      %p91 = scmp.ne.s32.totalorder %s76, %s90
      %p92 = scmp.eq.s32.totalorder %s24, 0
      %p93 = por %p91, %p92
      %s95 = sadd.s32 %s94, 1
      %p98 = scmp.eq.s32.totalorder %s18, 1
      %p99 = scmp.ne.s32.totalorder %s94, %s96
      %p100 = scmp.eq.s32.totalorder %s18, 0
      %p101 = por %p99, %p100
      %p102 = scmp.ne.s32.totalorder %s94, %s96
      %p103 = scmp.eq.s32.totalorder %s23, 1
      %p104 = por %p102, %p103
      %p105 = scmp.ne.s32.totalorder %s96, %s97
      %p106 = scmp.eq.s32.totalorder %s23, 0
      %p107 = por %p105, %p106
      %p108 = scmp.ne.s32.totalorder %s96, %s97
      %p109 = scmp.eq.s32.totalorder %s24, 1
      %p110 = por %p108, %p109
      %p112 = scmp.ne.s32.totalorder %s97, %s111
      %p113 = scmp.eq.s32.totalorder %s24, 0
      %p114 = por %p112, %p113
      %s116 = sadd.s32 %s115, 1
      %p119 = scmp.eq.s32.totalorder %s18, 1
      %p120 = scmp.ne.s32.totalorder %s115, %s117
      %p121 = scmp.eq.s32.totalorder %s18, 0
      %p122 = por %p120, %p121
      %p123 = scmp.ne.s32.totalorder %s115, %s117
      %p124 = scmp.eq.s32.totalorder %s23, 1
      %p125 = por %p123, %p124
      %p126 = scmp.ne.s32.totalorder %s117, %s118
      %p127 = scmp.eq.s32.totalorder %s23, 0
      %p128 = por %p126, %p127
      %p129 = scmp.ne.s32.totalorder %s117, %s118
      %p130 = scmp.eq.s32.totalorder %s24, 1
      %p131 = por %p129, %p130
      %p133 = scmp.ne.s32.totalorder %s118, %s132
      %p134 = scmp.eq.s32.totalorder %s24, 0
      %p135 = por %p133, %p134
      %s136 = ssub.s32 %s18, %s25
      %p137 = scmp.eq.s32.totalorder %s136, 0
      %s139 = sadd.s32 %s138, 1
      %s140 = scalar_select %p137, %s138, %s139
      %p143 = pneg %p137
      %p144 = scmp.eq.s32.totalorder %s18, 1
      %p145 = por %p143, %p144
      %p146 = scmp.ne.s32.totalorder %s138, %s141
      %p147 = scmp.eq.s32.totalorder %s18, 0
      %p148 = por %p146, %p147
      %p149 = scmp.ne.s32.totalorder %s138, %s141
      %p150 = scmp.eq.s32.totalorder %s23, 1
      %p151 = por %p149, %p150
      %p152 = scmp.ne.s32.totalorder %s141, %s142
      %p153 = scmp.eq.s32.totalorder %s23, 0
      %p154 = por %p152, %p153
      %p155 = scmp.ne.s32.totalorder %s141, %s142
      %p156 = scmp.eq.s32.totalorder %s24, 1
      %p157 = por %p155, %p156
      %p159 = scmp.ne.s32.totalorder %s142, %s158
      %p160 = scmp.eq.s32.totalorder %s24, 0
      %p161 = por %p159, %p160
      %p162 = scmp.le.s32.totalorder 1, %s18
      %p163 = scmp.lt.s32.totalorder %s18, 3
      %p164 = pnand %p162, %p163
      %p165 = pneg %p164
      // Predicated region
      $region9: #{generator_forward.1} parent=5 // pred_check
        _
      $region10: #{generator_forward.1} parent=5 // pred_check_branch
        %167 = sbr.rel (%p164) target = $region12
      $region11: #{generator_forward.1} parent=5 // pred_region
        %s168 = ssub.s32 %s18, 1
        // Predicated region
        $region13: #{generator_forward.1} parent=11 // pred_check
          %p169 = pneg %p65
        $region14: #{generator_forward.1} parent=11 // pred_check_branch
          %171 = sbr.rel (%p169) target = $region16
        $region15: #{generator_forward.1} parent=11 // pred_region
          %s173 = ssub.s32 4096, 4096
          %174 = vsyncadd [#allocation6], %s173
          %s175 = sshll.u32 [#allocation5], 4
          %s176 = int_to_ptr.vmem [resolvable:$true] %s175
          %181 = dma.hbm_to_vmem [thread:$0]  %s1, 4096, %s176, [#allocation6], 256, 256, 16
        $region16: #{generator_forward.1} parent=11 // pred_fallthru
          _
        // Predicated region
        $region17: #{generator_forward.1} parent=11 // pred_check
          %p182 = pneg %p86
        $region18: #{generator_forward.1} parent=11 // pred_check_branch
          %184 = sbr.rel (%p182) target = $region20
        $region19: #{generator_forward.1} parent=11 // pred_region
          _
        $region20: #{generator_forward.1} parent=11 // pred_fallthru
          _
        // Predicated region
        $region21: #{generator_forward.1} parent=11 // pred_check
          %p185 = pneg %p107
        $region22: #{generator_forward.1} parent=11 // pred_check_branch
          %187 = sbr.rel (%p185) target = $region24
        $region23: #{generator_forward.1} parent=11 // pred_region
          %s189 = ssub.s32 16384, 16384
          %190 = vsyncadd [#allocation6], %s189
          %s191 = sshll.u32 [#allocation7], 4
          %s192 = int_to_ptr.vmem [resolvable:$true] %s191
          %197 = dma.hbm_to_vmem [thread:$0]  %s3, 16384, %s192, [#allocation6], 256, 256, 16
        $region24: #{generator_forward.1} parent=11 // pred_fallthru
          _
        // Predicated region
        $region25: #{generator_forward.1} parent=11 // pred_check
          %p198 = pneg %p128
        $region26: #{generator_forward.1} parent=11 // pred_check_branch
          %200 = sbr.rel (%p198) target = $region28
        $region27: #{generator_forward.1} parent=11 // pred_region
          _
        $region28: #{generator_forward.1} parent=11 // pred_fallthru
          _
      $region12: #{generator_forward.1} parent=5 // pred_fallthru
        _
      %p201 = scmp.lt.s32.totalorder %s18, 2
      // Predicated region
      $region29: #{generator_forward.1} parent=5 // pred_check
        %p202 = pneg %p201
      $region30: #{generator_forward.1} parent=5 // pred_check_branch
        %204 = sbr.rel (%p202) target = $region32
      $region31: #{generator_forward.1} parent=5 // pred_region
        // Predicated region
        $region33: #{generator_forward.1} parent=31 // pred_check
          %p205 = pneg %p38
        $region34: #{generator_forward.1} parent=31 // pred_check_branch
          %207 = sbr.rel (%p205) target = $region36
        $region35: #{generator_forward.1} parent=31 // pred_region
          %s208 = sand.u32 %s28, 1
          %s209 = scalar_lea.sflag [#allocation3], %s208
          %s210 = sand.u32 %s28, 1
          %s211 = smul.addr %s210, 16
          %s212 = scalar_lea.vmem [#allocation2], %s211
          %s213 = smul.u32 4, %s18
          %s215 = ssub.s32 256, 256
          %216 = vsyncadd %s209, %s215
          %s217 = smul.addr %s213, 64
          %s218 = scalar_lea.hbm %s0, %s217
          %s219 = sshll.u32 %s212, 4
          %s220 = int_to_ptr.vmem [resolvable:$true] %s219
          %225 = dma.hbm_to_vmem [thread:$0]  %s218, 256, %s220, %s209, 64, 64, 4
        $region36: #{generator_forward.1} parent=31 // pred_fallthru
          _
      $region32: #{generator_forward.1} parent=5 // pred_fallthru
        _
      %p226 = scmp.le.s32.totalorder 1, %s18
      %p227 = scmp.lt.s32.totalorder %s18, 3
      %p228 = pnand %p226, %p227
      %p229 = pneg %p228
      // Predicated region
      $region37: #{generator_forward.1} parent=5 // pred_check
        _
      $region38: #{generator_forward.1} parent=5 // pred_check_branch
        %231 = sbr.rel (%p228) target = $region40
      $region39: #{generator_forward.1} parent=5 // pred_region
        %s232 = ssub.s32 %s18, 1
        %s233 = sand.u32 %s31, 1
        %s234 = scalar_lea.sflag [#allocation3], %s233
        %s235 = sand.u32 %s31, 1
        %s236 = smul.addr %s235, 16
        %s237 = scalar_lea.vmem [#allocation2], %s236
        // Predicated region
        $region41: #{generator_forward.1} parent=39 // pred_check
          %p238 = pneg %p44
        $region42: #{generator_forward.1} parent=39 // pred_check_branch
          %240 = sbr.rel (%p238) target = $region44
        $region43: #{generator_forward.1} parent=39 // pred_region
          %241 = dma.done %s234, 256
        $region44: #{generator_forward.1} parent=39 // pred_fallthru
          _
        // Predicated region
        $region45: #{generator_forward.1} parent=39 // pred_check
          %p242 = pneg %p65
        $region46: #{generator_forward.1} parent=39 // pred_check_branch
          %244 = sbr.rel (%p242) target = $region48
        $region47: #{generator_forward.1} parent=39 // pred_region
          %245 = dma.done [#allocation6], 4096
        $region48: #{generator_forward.1} parent=39 // pred_fallthru
          _
        // Predicated region
        $region49: #{generator_forward.1} parent=39 // pred_check
          %p246 = pneg %p107
        $region50: #{generator_forward.1} parent=39 // pred_check_branch
          %248 = sbr.rel (%p246) target = $region52
        $region51: #{generator_forward.1} parent=39 // pred_region
          %249 = dma.done [#allocation6], 16384
        $region52: #{generator_forward.1} parent=39 // pred_fallthru
          _
        %s250 = sand.u32 %s31, 1
        %s251 = scalar_lea.sflag [#allocation3], %s250
        %s252 = sand.u32 %s31, 1
        %s253 = smul.addr %s252, 16
        %s254 = scalar_lea.vmem [#allocation2], %s253
        %p255 = pneg %p44
        %p256 = pneg %p41
        %p257 = pneg %p65
        %p258 = pneg %p62
        %p259 = pneg %p86
        %p260 = pneg %p83
        %p261 = pneg %p107
        %p262 = pneg %p104
        %p263 = pneg %p128
        %p264 = pneg %p125
        %p265 = pneg %p154
        %p266 = pneg %p151
        %s267 = sand.u32 %s141, 1
        %s268 = scalar_lea.sflag [#allocation4], %s267
        %s269 = sand.u32 %s141, 1
        %s270 = smul.addr %s269, 64
        %s271 = scalar_lea.vmem [#allocation8], %s270
        %s272 = smul.u32 4, %s23
        %s273 = smul.u32 4, %s23
        %v275 = vld [vmem:[%s237] sm:$0xf]
        %v276 = vld [vmem:[%s237 + $0x4] sm:$0xf]
        %v277 = vld [vmem:[%s237 + $0x8] sm:$0xf]
        %v278 = vld [vmem:[%s237 + $0xc] sm:$0xf]
        %v279 = vld [vmem:[#allocation5] sm:$0xff]
        %v280 = vld [vmem:[#allocation5 + $0x8] sm:$0xff]
        %v281 = vld [vmem:[#allocation5 + $0x10] sm:$0xff]
        %v282 = vld [vmem:[#allocation5 + $0x18] sm:$0xff]
        %v283 = vld [vmem:[#allocation5 + $0x20] sm:$0xff]
        %v284 = vld [vmem:[#allocation5 + $0x28] sm:$0xff]
        %v285 = vld [vmem:[#allocation5 + $0x30] sm:$0xff]
        %v286 = vld [vmem:[#allocation5 + $0x38] sm:$0xff]
        %v287 = vld [vmem:[#allocation5 + $0x40] sm:$0xff]
        %v288 = vld [vmem:[#allocation5 + $0x48] sm:$0xff]
        %v289 = vld [vmem:[#allocation5 + $0x50] sm:$0xff]
        %v290 = vld [vmem:[#allocation5 + $0x58] sm:$0xff]
        %v291 = vld [vmem:[#allocation5 + $0x60] sm:$0xff]
        %v292 = vld [vmem:[#allocation5 + $0x68] sm:$0xff]
        %v293 = vld [vmem:[#allocation5 + $0x70] sm:$0xff]
        %v294 = vld [vmem:[#allocation5 + $0x78] sm:$0xff]
        %v295 = vld [vmem:[#allocation5 + $0x80] sm:$0xff]
        %v296 = vld [vmem:[#allocation5 + $0x88] sm:$0xff]
        %v297 = vld [vmem:[#allocation5 + $0x90] sm:$0xff]
        %v298 = vld [vmem:[#allocation5 + $0x98] sm:$0xff]
        %v299 = vld [vmem:[#allocation5 + $0xa0] sm:$0xff]
        %v300 = vld [vmem:[#allocation5 + $0xa8] sm:$0xff]
        %v301 = vld [vmem:[#allocation5 + $0xb0] sm:$0xff]
        %v302 = vld [vmem:[#allocation5 + $0xb8] sm:$0xff]
        %v303 = vld [vmem:[#allocation5 + $0xc0] sm:$0xff]
        %v304 = vld [vmem:[#allocation5 + $0xc8] sm:$0xff]
        %v305 = vld [vmem:[#allocation5 + $0xd0] sm:$0xff]
        %v306 = vld [vmem:[#allocation5 + $0xd8] sm:$0xff]
        %v307 = vld [vmem:[#allocation5 + $0xe0] sm:$0xff]
        %v308 = vld [vmem:[#allocation5 + $0xe8] sm:$0xff]
        %v309 = vld [vmem:[#allocation5 + $0xf0] sm:$0xff]
        %v310 = vld [vmem:[#allocation5 + $0xf8] sm:$0xff]
        %v311 = vld [vmem:[%s2] sm:$0xf]
        %v313 = vlaneseq
        %v314 = vshrl.u32 %v313, 7
        %v315 = vsub.s32 0, %v314
        %v316 = vrot.slane %v311, %v315
        %v317 = vlaneseq
        %v318 = vshrl.u32 %v317, 7
        %v319 = vsub.s32 1, %v318
        %v320 = vrot.slane %v311, %v319
        %v321 = vlaneseq
        %v322 = vshrl.u32 %v321, 7
        %v323 = vsub.s32 2, %v322
        %v324 = vrot.slane %v311, %v323
        %v325 = vlaneseq
        %v326 = vshrl.u32 %v325, 7
        %v327 = vsub.s32 3, %v326
        %v328 = vrot.slane %v311, %v327
        %v337 = vunpack.c.l.b16 %v275
        %v338 = vunpack.c.l.b16 %v276
        %v339 = vunpack.c.l.b16 %v277
        %v340 = vunpack.c.l.b16 %v278
        %v341 = vpack.c.b16 %v338, %v337
        %v342 = vpack.c.b16 %v340, %v339
        %v377 = vunpack.c.l.b16 %v279
        %v378 = vunpack.c.h.b16 %v279
        %v379 = vunpack.c.l.b16 %v280
        %v380 = vunpack.c.h.b16 %v280
        %v381 = vunpack.c.l.b16 %v281
        %v382 = vunpack.c.h.b16 %v281
        %v383 = vunpack.c.l.b16 %v282
        %v384 = vunpack.c.h.b16 %v282
        %v385 = vunpack.c.l.b16 %v283
        %v386 = vunpack.c.h.b16 %v283
        %v387 = vunpack.c.l.b16 %v284
        %v388 = vunpack.c.h.b16 %v284
        %v389 = vunpack.c.l.b16 %v285
        %v390 = vunpack.c.h.b16 %v285
        %v391 = vunpack.c.l.b16 %v286
        %v392 = vunpack.c.h.b16 %v286
        %v393 = vunpack.c.l.b16 %v287
        %v394 = vunpack.c.h.b16 %v287
        %v395 = vunpack.c.l.b16 %v288
        %v396 = vunpack.c.h.b16 %v288
        %v397 = vunpack.c.l.b16 %v289
        %v398 = vunpack.c.h.b16 %v289
        %v399 = vunpack.c.l.b16 %v290
        %v400 = vunpack.c.h.b16 %v290
        %v401 = vunpack.c.l.b16 %v291
        %v402 = vunpack.c.h.b16 %v291
        %v403 = vunpack.c.l.b16 %v292
        %v404 = vunpack.c.h.b16 %v292
        %v405 = vunpack.c.l.b16 %v293
        %v406 = vunpack.c.h.b16 %v293
        %v407 = vunpack.c.l.b16 %v294
        %v408 = vunpack.c.h.b16 %v294
        %v409 = vunpack.c.l.b16 %v295
        %v410 = vunpack.c.h.b16 %v295
        %v411 = vunpack.c.l.b16 %v296
        %v412 = vunpack.c.h.b16 %v296
        %v413 = vunpack.c.l.b16 %v297
        %v414 = vunpack.c.h.b16 %v297
        %v415 = vunpack.c.l.b16 %v298
        %v416 = vunpack.c.h.b16 %v298
        %v417 = vunpack.c.l.b16 %v299
        %v418 = vunpack.c.h.b16 %v299
        %v419 = vunpack.c.l.b16 %v300
        %v420 = vunpack.c.h.b16 %v300
        %v421 = vunpack.c.l.b16 %v301
        %v422 = vunpack.c.h.b16 %v301
        %v423 = vunpack.c.l.b16 %v302
        %v424 = vunpack.c.h.b16 %v302
        %v425 = vunpack.c.l.b16 %v303
        %v426 = vunpack.c.h.b16 %v303
        %v427 = vunpack.c.l.b16 %v304
        %v428 = vunpack.c.h.b16 %v304
        %v429 = vunpack.c.l.b16 %v305
        %v430 = vunpack.c.h.b16 %v305
        %v431 = vunpack.c.l.b16 %v306
        %v432 = vunpack.c.h.b16 %v306
        %v433 = vunpack.c.l.b16 %v307
        %v434 = vunpack.c.h.b16 %v307
        %v435 = vunpack.c.l.b16 %v308
        %v436 = vunpack.c.h.b16 %v308
        %v437 = vunpack.c.l.b16 %v309
        %v438 = vunpack.c.h.b16 %v309
        %v439 = vunpack.c.l.b16 %v310
        %v440 = vunpack.c.h.b16 %v310
        %v441 = vpack.c.b16 %v381, %v377
        %v442 = vpack.c.b16 %v382, %v378
        %v443 = vpack.c.b16 %v383, %v379
        %v444 = vpack.c.b16 %v384, %v380
        %v445 = vpack.c.b16 %v389, %v385
        %v446 = vpack.c.b16 %v390, %v386
        %v447 = vpack.c.b16 %v391, %v387
        %v448 = vpack.c.b16 %v392, %v388
        %v449 = vpack.c.b16 %v397, %v393
        %v450 = vpack.c.b16 %v398, %v394
        %v451 = vpack.c.b16 %v399, %v395
        %v452 = vpack.c.b16 %v400, %v396
        %v453 = vpack.c.b16 %v405, %v401
        %v454 = vpack.c.b16 %v406, %v402
        %v455 = vpack.c.b16 %v407, %v403
        %v456 = vpack.c.b16 %v408, %v404
        %v457 = vpack.c.b16 %v413, %v409
        %v458 = vpack.c.b16 %v414, %v410
        %v459 = vpack.c.b16 %v415, %v411
        %v460 = vpack.c.b16 %v416, %v412
        %v461 = vpack.c.b16 %v421, %v417
        %v462 = vpack.c.b16 %v422, %v418
        %v463 = vpack.c.b16 %v423, %v419
        %v464 = vpack.c.b16 %v424, %v420
        %v465 = vpack.c.b16 %v429, %v425
        %v466 = vpack.c.b16 %v430, %v426
        %v467 = vpack.c.b16 %v431, %v427
        %v468 = vpack.c.b16 %v432, %v428
        %v469 = vpack.c.b16 %v437, %v433
        %v470 = vpack.c.b16 %v438, %v434
        %v471 = vpack.c.b16 %v439, %v435
        %v472 = vpack.c.b16 %v440, %v436
        %505 = vmatprep.subr.bf16.mxu0 %v442
        %506 = vmatpush1.bf16.msra.mxu0 %v441
        %507 = vmatprep.subr.bf16.mxu0 %v446
        %508 = vmatpush1.bf16.msra.mxu0 %v445
        %509 = vmatprep.subr.bf16.mxu0 %v450
        %510 = vmatpush1.bf16.msra.mxu0 %v449
        %511 = vmatprep.subr.bf16.mxu0 %v454
        %512 = vmatpush1.bf16.msra.mxu0 %v453
        %513 = vmatprep.subr.bf16.mxu0 %v458
        %514 = vmatpush1.bf16.msra.mxu0 %v457
        %515 = vmatprep.subr.bf16.mxu0 %v462
        %516 = vmatpush1.bf16.msra.mxu0 %v461
        %517 = vmatprep.subr.bf16.mxu0 %v466
        %518 = vmatpush1.bf16.msra.mxu0 %v465
        %519 = vmatprep.subr.bf16.mxu0 %v470
        %520 = vmatpush1.bf16.msra.mxu0 %v469
        %521 = vmatprep.subr.bf16.mxu0 0
        %522 = vmatpush1.bf16.msra.mxu0 0
        %523 = vmatprep.subr.bf16.mxu0 0
        %524 = vmatpush1.bf16.msra.mxu0 0
        %525 = vmatprep.subr.bf16.mxu0 0
        %526 = vmatpush1.bf16.msra.mxu0 0
        %527 = vmatprep.subr.bf16.mxu0 0
        %528 = vmatpush1.bf16.msra.mxu0 0
        %529 = vmatprep.subr.bf16.mxu0 0
        %530 = vmatpush1.bf16.msra.mxu0 0
        %531 = vmatprep.subr.bf16.mxu0 0
        %532 = vmatpush1.bf16.msra.mxu0 0
        %533 = vmatprep.subr.bf16.mxu0 0
        %534 = vmatpush1.bf16.msra.mxu0 0
        %535 = vmatprep.subr.bf16.mxu0 0
        %536 = vmatpush1.bf16.msra.mxu0 0
        %537 = vmatprep.mubr.bf16.mxu0 0
        %538 = vmatmul.mubr.bf16.gmra.mrb[0].mxu0 %v341
        %v539 = vpop.f32.mrb[0].mxu0
        %v540 = vadd.f32 %v316, %v539
        %v541 = vpop.f32.mrb[0].mxu0
        %v542 = vadd.f32 %v320, %v541
        %v543 = vpop.f32.mrb[0].mxu0
        %v544 = vadd.f32 %v316, %v543
        %v545 = vpop.f32.mrb[0].mxu0
        %v546 = vadd.f32 %v320, %v545
        %547 = vmatprep.mubr.bf16.mxu0 0
        %548 = vmatmul.mubr.bf16.gmra.mrb[0].mxu0 %v342
        %v549 = vpop.f32.mrb[0].mxu0
        %v550 = vadd.f32 %v316, %v549
        %v551 = vpop.f32.mrb[0].mxu0
        %v552 = vadd.f32 %v320, %v551
        %v553 = vpop.f32.mrb[0].mxu0
        %v554 = vadd.f32 %v316, %v553
        %v555 = vpop.f32.mrb[0].mxu0
        %v556 = vadd.f32 %v320, %v555
        %557 = vdwg.mxu0
        %558 = vmatprep.subr.bf16.mxu0 %v444
        %559 = vmatpush1.bf16.msra.mxu0 %v443
        %560 = vmatprep.subr.bf16.mxu0 %v448
        %561 = vmatpush1.bf16.msra.mxu0 %v447
        %562 = vmatprep.subr.bf16.mxu0 %v452
        %563 = vmatpush1.bf16.msra.mxu0 %v451
        %564 = vmatprep.subr.bf16.mxu0 %v456
        %565 = vmatpush1.bf16.msra.mxu0 %v455
        %566 = vmatprep.subr.bf16.mxu0 %v460
        %567 = vmatpush1.bf16.msra.mxu0 %v459
        %568 = vmatprep.subr.bf16.mxu0 %v464
        %569 = vmatpush1.bf16.msra.mxu0 %v463
        %570 = vmatprep.subr.bf16.mxu0 %v468
        %571 = vmatpush1.bf16.msra.mxu0 %v467
        %572 = vmatprep.subr.bf16.mxu0 %v472
        %573 = vmatpush1.bf16.msra.mxu0 %v471
        %574 = vmatprep.subr.bf16.mxu0 0
        %575 = vmatpush1.bf16.msra.mxu0 0
        %576 = vmatprep.subr.bf16.mxu0 0
        %577 = vmatpush1.bf16.msra.mxu0 0
        %578 = vmatprep.subr.bf16.mxu0 0
        %579 = vmatpush1.bf16.msra.mxu0 0
        %580 = vmatprep.subr.bf16.mxu0 0
        %581 = vmatpush1.bf16.msra.mxu0 0
        %582 = vmatprep.subr.bf16.mxu0 0
        %583 = vmatpush1.bf16.msra.mxu0 0
        %584 = vmatprep.subr.bf16.mxu0 0
        %585 = vmatpush1.bf16.msra.mxu0 0
        %586 = vmatprep.subr.bf16.mxu0 0
        %587 = vmatpush1.bf16.msra.mxu0 0
        %588 = vmatprep.subr.bf16.mxu0 0
        %589 = vmatpush1.bf16.msra.mxu0 0
        %590 = vmatprep.mubr.bf16.mxu0 0
        %591 = vmatmul.mubr.bf16.gmra.mrb[0].mxu0 %v341
        %v592 = vpop.f32.mrb[0].mxu0
        %v593 = vadd.f32 %v324, %v592
        %v594 = vpop.f32.mrb[0].mxu0
        %v595 = vadd.f32 %v328, %v594
        %v596 = vpop.f32.mrb[0].mxu0
        %v597 = vadd.f32 %v324, %v596
        %v598 = vpop.f32.mrb[0].mxu0
        %v599 = vadd.f32 %v328, %v598
        %600 = vmatprep.mubr.bf16.mxu0 0
        %601 = vmatmul.mubr.bf16.gmra.mrb[0].mxu0 %v342
        %v602 = vpop.f32.mrb[0].mxu0
        %v603 = vadd.f32 %v324, %v602
        %v604 = vpop.f32.mrb[0].mxu0
        %v605 = vadd.f32 %v328, %v604
        %v606 = vpop.f32.mrb[0].mxu0
        %v607 = vadd.f32 %v324, %v606
        %v608 = vpop.f32.mrb[0].mxu0
        %v609 = vadd.f32 %v328, %v608
        %610 = vdwg.mxu0
        %vm611 = vcmp.gt.f32.partialorder %v540, 0.0
        %vm612 = vcmp.gt.f32.partialorder %v542, 0.0
        %vm613 = vcmp.gt.f32.partialorder %v593, 0.0
        %vm614 = vcmp.gt.f32.partialorder %v595, 0.0
        %vm615 = vcmp.gt.f32.partialorder %v544, 0.0
        %vm616 = vcmp.gt.f32.partialorder %v546, 0.0
        %vm617 = vcmp.gt.f32.partialorder %v597, 0.0
        %vm618 = vcmp.gt.f32.partialorder %v599, 0.0
        %vm619 = vcmp.gt.f32.partialorder %v550, 0.0
        %vm620 = vcmp.gt.f32.partialorder %v552, 0.0
        %vm621 = vcmp.gt.f32.partialorder %v603, 0.0
        %vm622 = vcmp.gt.f32.partialorder %v605, 0.0
        %vm623 = vcmp.gt.f32.partialorder %v554, 0.0
        %vm624 = vcmp.gt.f32.partialorder %v556, 0.0
        %vm625 = vcmp.gt.f32.partialorder %v607, 0.0
        %vm626 = vcmp.gt.f32.partialorder %v609, 0.0
        %v627 = vmul.f32 %v540, 0.2
        %v628 = vmul.f32 %v542, 0.2
        %v629 = vmul.f32 %v593, 0.2
        %v630 = vmul.f32 %v595, 0.2
        %v631 = vmul.f32 %v544, 0.2
        %v632 = vmul.f32 %v546, 0.2
        %v633 = vmul.f32 %v597, 0.2
        %v634 = vmul.f32 %v599, 0.2
        %v635 = vmul.f32 %v550, 0.2
        %v636 = vmul.f32 %v552, 0.2
        %v637 = vmul.f32 %v603, 0.2
        %v638 = vmul.f32 %v605, 0.2
        %v639 = vmul.f32 %v554, 0.2
        %v640 = vmul.f32 %v556, 0.2
        %v641 = vmul.f32 %v607, 0.2
        %v642 = vmul.f32 %v609, 0.2
        %v643 = vsel %vm611, %v540, %v627
        %v644 = vsel %vm612, %v542, %v628
        %v645 = vsel %vm613, %v593, %v629
        %v646 = vsel %vm614, %v595, %v630
        %v647 = vsel %vm615, %v544, %v631
        %v648 = vsel %vm616, %v546, %v632
        %v649 = vsel %vm617, %v597, %v633
        %v650 = vsel %vm618, %v599, %v634
        %v651 = vsel %vm619, %v550, %v635
        %v652 = vsel %vm620, %v552, %v636
        %v653 = vsel %vm621, %v603, %v637
        %v654 = vsel %vm622, %v605, %v638
        %v655 = vsel %vm623, %v554, %v639
        %v656 = vsel %vm624, %v556, %v640
        %v657 = vsel %vm625, %v607, %v641
        %v658 = vsel %vm626, %v609, %v642
        %v659 = vld [vmem:[#allocation7] sm:$0xff]
        %v660 = vld [vmem:[#allocation7 + $0x8] sm:$0xff]
        %v661 = vld [vmem:[#allocation7 + $0x10] sm:$0xff]
        %v662 = vld [vmem:[#allocation7 + $0x18] sm:$0xff]
        %v663 = vld [vmem:[#allocation7 + $0x20] sm:$0xff]
        %v664 = vld [vmem:[#allocation7 + $0x28] sm:$0xff]
        %v665 = vld [vmem:[#allocation7 + $0x30] sm:$0xff]
        %v666 = vld [vmem:[#allocation7 + $0x38] sm:$0xff]
        %v667 = vld [vmem:[#allocation7 + $0x40] sm:$0xff]
        %v668 = vld [vmem:[#allocation7 + $0x48] sm:$0xff]
        %v669 = vld [vmem:[#allocation7 + $0x50] sm:$0xff]
        %v670 = vld [vmem:[#allocation7 + $0x58] sm:$0xff]
        %v671 = vld [vmem:[#allocation7 + $0x60] sm:$0xff]
        %v672 = vld [vmem:[#allocation7 + $0x68] sm:$0xff]
        %v673 = vld [vmem:[#allocation7 + $0x70] sm:$0xff]
        %v674 = vld [vmem:[#allocation7 + $0x78] sm:$0xff]
        %v675 = vld [vmem:[#allocation7 + $0x80] sm:$0xff]
        %v676 = vld [vmem:[#allocation7 + $0x88] sm:$0xff]
        %v677 = vld [vmem:[#allocation7 + $0x90] sm:$0xff]
        %v678 = vld [vmem:[#allocation7 + $0x98] sm:$0xff]
        %v679 = vld [vmem:[#allocation7 + $0xa0] sm:$0xff]
        %v680 = vld [vmem:[#allocation7 + $0xa8] sm:$0xff]
        %v681 = vld [vmem:[#allocation7 + $0xb0] sm:$0xff]
        %v682 = vld [vmem:[#allocation7 + $0xb8] sm:$0xff]
        %v683 = vld [vmem:[#allocation7 + $0xc0] sm:$0xff]
        %v684 = vld [vmem:[#allocation7 + $0xc8] sm:$0xff]
        %v685 = vld [vmem:[#allocation7 + $0xd0] sm:$0xff]
        %v686 = vld [vmem:[#allocation7 + $0xd8] sm:$0xff]
        %v687 = vld [vmem:[#allocation7 + $0xe0] sm:$0xff]
        %v688 = vld [vmem:[#allocation7 + $0xe8] sm:$0xff]
        %v689 = vld [vmem:[#allocation7 + $0xf0] sm:$0xff]
        %v690 = vld [vmem:[#allocation7 + $0xf8] sm:$0xff]
        %v691 = vld [vmem:[#allocation7 + $0x100] sm:$0xff]
        %v692 = vld [vmem:[#allocation7 + $0x108] sm:$0xff]
        %v693 = vld [vmem:[#allocation7 + $0x110] sm:$0xff]
        %v694 = vld [vmem:[#allocation7 + $0x118] sm:$0xff]
        %v695 = vld [vmem:[#allocation7 + $0x120] sm:$0xff]
        %v696 = vld [vmem:[#allocation7 + $0x128] sm:$0xff]
        %v697 = vld [vmem:[#allocation7 + $0x130] sm:$0xff]
        %v698 = vld [vmem:[#allocation7 + $0x138] sm:$0xff]
        %v699 = vld [vmem:[#allocation7 + $0x140] sm:$0xff]
        %v700 = vld [vmem:[#allocation7 + $0x148] sm:$0xff]
        %v701 = vld [vmem:[#allocation7 + $0x150] sm:$0xff]
        %v702 = vld [vmem:[#allocation7 + $0x158] sm:$0xff]
        %v703 = vld [vmem:[#allocation7 + $0x160] sm:$0xff]
        %v704 = vld [vmem:[#allocation7 + $0x168] sm:$0xff]
        %v705 = vld [vmem:[#allocation7 + $0x170] sm:$0xff]
        %v706 = vld [vmem:[#allocation7 + $0x178] sm:$0xff]
        %v707 = vld [vmem:[#allocation7 + $0x180] sm:$0xff]
        %v708 = vld [vmem:[#allocation7 + $0x188] sm:$0xff]
        %v709 = vld [vmem:[#allocation7 + $0x190] sm:$0xff]
        %v710 = vld [vmem:[#allocation7 + $0x198] sm:$0xff]
        %v711 = vld [vmem:[#allocation7 + $0x1a0] sm:$0xff]
        %v712 = vld [vmem:[#allocation7 + $0x1a8] sm:$0xff]
        %v713 = vld [vmem:[#allocation7 + $0x1b0] sm:$0xff]
        %v714 = vld [vmem:[#allocation7 + $0x1b8] sm:$0xff]
        %v715 = vld [vmem:[#allocation7 + $0x1c0] sm:$0xff]
        %v716 = vld [vmem:[#allocation7 + $0x1c8] sm:$0xff]
        %v717 = vld [vmem:[#allocation7 + $0x1d0] sm:$0xff]
        %v718 = vld [vmem:[#allocation7 + $0x1d8] sm:$0xff]
        %v719 = vld [vmem:[#allocation7 + $0x1e0] sm:$0xff]
        %v720 = vld [vmem:[#allocation7 + $0x1e8] sm:$0xff]
        %v721 = vld [vmem:[#allocation7 + $0x1f0] sm:$0xff]
        %v722 = vld [vmem:[#allocation7 + $0x1f8] sm:$0xff]
        %v723 = vld [vmem:[#allocation7 + $0x200] sm:$0xff]
        %v724 = vld [vmem:[#allocation7 + $0x208] sm:$0xff]
        %v725 = vld [vmem:[#allocation7 + $0x210] sm:$0xff]
        %v726 = vld [vmem:[#allocation7 + $0x218] sm:$0xff]
        %v727 = vld [vmem:[#allocation7 + $0x220] sm:$0xff]
        %v728 = vld [vmem:[#allocation7 + $0x228] sm:$0xff]
        %v729 = vld [vmem:[#allocation7 + $0x230] sm:$0xff]
        %v730 = vld [vmem:[#allocation7 + $0x238] sm:$0xff]
        %v731 = vld [vmem:[#allocation7 + $0x240] sm:$0xff]
        %v732 = vld [vmem:[#allocation7 + $0x248] sm:$0xff]
        %v733 = vld [vmem:[#allocation7 + $0x250] sm:$0xff]
        %v734 = vld [vmem:[#allocation7 + $0x258] sm:$0xff]
        %v735 = vld [vmem:[#allocation7 + $0x260] sm:$0xff]
        %v736 = vld [vmem:[#allocation7 + $0x268] sm:$0xff]
        %v737 = vld [vmem:[#allocation7 + $0x270] sm:$0xff]
        %v738 = vld [vmem:[#allocation7 + $0x278] sm:$0xff]
        %v739 = vld [vmem:[#allocation7 + $0x280] sm:$0xff]
        %v740 = vld [vmem:[#allocation7 + $0x288] sm:$0xff]
        %v741 = vld [vmem:[#allocation7 + $0x290] sm:$0xff]
        %v742 = vld [vmem:[#allocation7 + $0x298] sm:$0xff]
        %v743 = vld [vmem:[#allocation7 + $0x2a0] sm:$0xff]
        %v744 = vld [vmem:[#allocation7 + $0x2a8] sm:$0xff]
        %v745 = vld [vmem:[#allocation7 + $0x2b0] sm:$0xff]
        %v746 = vld [vmem:[#allocation7 + $0x2b8] sm:$0xff]
        %v747 = vld [vmem:[#allocation7 + $0x2c0] sm:$0xff]
        %v748 = vld [vmem:[#allocation7 + $0x2c8] sm:$0xff]
        %v749 = vld [vmem:[#allocation7 + $0x2d0] sm:$0xff]
        %v750 = vld [vmem:[#allocation7 + $0x2d8] sm:$0xff]
        %v751 = vld [vmem:[#allocation7 + $0x2e0] sm:$0xff]
        %v752 = vld [vmem:[#allocation7 + $0x2e8] sm:$0xff]
        %v753 = vld [vmem:[#allocation7 + $0x2f0] sm:$0xff]
        %v754 = vld [vmem:[#allocation7 + $0x2f8] sm:$0xff]
        %v755 = vld [vmem:[#allocation7 + $0x300] sm:$0xff]
        %v756 = vld [vmem:[#allocation7 + $0x308] sm:$0xff]
        %v757 = vld [vmem:[#allocation7 + $0x310] sm:$0xff]
        %v758 = vld [vmem:[#allocation7 + $0x318] sm:$0xff]
        %v759 = vld [vmem:[#allocation7 + $0x320] sm:$0xff]
        %v760 = vld [vmem:[#allocation7 + $0x328] sm:$0xff]
        %v761 = vld [vmem:[#allocation7 + $0x330] sm:$0xff]
        %v762 = vld [vmem:[#allocation7 + $0x338] sm:$0xff]
        %v763 = vld [vmem:[#allocation7 + $0x340] sm:$0xff]
        %v764 = vld [vmem:[#allocation7 + $0x348] sm:$0xff]
        %v765 = vld [vmem:[#allocation7 + $0x350] sm:$0xff]
        %v766 = vld [vmem:[#allocation7 + $0x358] sm:$0xff]
        %v767 = vld [vmem:[#allocation7 + $0x360] sm:$0xff]
        %v768 = vld [vmem:[#allocation7 + $0x368] sm:$0xff]
        %v769 = vld [vmem:[#allocation7 + $0x370] sm:$0xff]
        %v770 = vld [vmem:[#allocation7 + $0x378] sm:$0xff]
        %v771 = vld [vmem:[#allocation7 + $0x380] sm:$0xff]
        %v772 = vld [vmem:[#allocation7 + $0x388] sm:$0xff]
        %v773 = vld [vmem:[#allocation7 + $0x390] sm:$0xff]
        %v774 = vld [vmem:[#allocation7 + $0x398] sm:$0xff]
        %v775 = vld [vmem:[#allocation7 + $0x3a0] sm:$0xff]
        %v776 = vld [vmem:[#allocation7 + $0x3a8] sm:$0xff]
        %v777 = vld [vmem:[#allocation7 + $0x3b0] sm:$0xff]
        %v778 = vld [vmem:[#allocation7 + $0x3b8] sm:$0xff]
        %v779 = vld [vmem:[#allocation7 + $0x3c0] sm:$0xff]
        %v780 = vld [vmem:[#allocation7 + $0x3c8] sm:$0xff]
        %v781 = vld [vmem:[#allocation7 + $0x3d0] sm:$0xff]
        %v782 = vld [vmem:[#allocation7 + $0x3d8] sm:$0xff]
        %v783 = vld [vmem:[#allocation7 + $0x3e0] sm:$0xff]
        %v784 = vld [vmem:[#allocation7 + $0x3e8] sm:$0xff]
        %v785 = vld [vmem:[#allocation7 + $0x3f0] sm:$0xff]
        %v786 = vld [vmem:[#allocation7 + $0x3f8] sm:$0xff]
        %v787 = vpack.c.bf16 %v647, %v643
        %v788 = vpack.c.bf16 %v648, %v644
        %v789 = vpack.c.bf16 %v649, %v645
        %v790 = vpack.c.bf16 %v650, %v646
        %v791 = vpack.c.bf16 %v655, %v651
        %v792 = vpack.c.bf16 %v656, %v652
        %v793 = vpack.c.bf16 %v657, %v653
        %v794 = vpack.c.bf16 %v658, %v654
        %v795 = vld [vmem:[%s4] sm:$0xf]
        %v797 = vlaneseq
        %v798 = vshrl.u32 %v797, 7
        %v799 = vsub.s32 0, %v798
        %v800 = vrot.slane %v795, %v799
        %v801 = vlaneseq
        %v802 = vshrl.u32 %v801, 7
        %v803 = vsub.s32 1, %v802
        %v804 = vrot.slane %v795, %v803
        %v805 = vlaneseq
        %v806 = vshrl.u32 %v805, 7
        %v807 = vsub.s32 2, %v806
        %v808 = vrot.slane %v795, %v807
        %v809 = vlaneseq
        %v810 = vshrl.u32 %v809, 7
        %v811 = vsub.s32 3, %v810
        %v812 = vrot.slane %v795, %v811
        %v945 = vunpack.c.l.b16 %v659
        %v946 = vunpack.c.h.b16 %v659
        %v947 = vunpack.c.l.b16 %v660
        %v948 = vunpack.c.h.b16 %v660
        %v949 = vunpack.c.l.b16 %v661
        %v950 = vunpack.c.h.b16 %v661
        %v951 = vunpack.c.l.b16 %v662
        %v952 = vunpack.c.h.b16 %v662
        %v953 = vunpack.c.l.b16 %v663
        %v954 = vunpack.c.h.b16 %v663
        %v955 = vunpack.c.l.b16 %v664
        %v956 = vunpack.c.h.b16 %v664
        %v957 = vunpack.c.l.b16 %v665
        %v958 = vunpack.c.h.b16 %v665
        %v959 = vunpack.c.l.b16 %v666
        %v960 = vunpack.c.h.b16 %v666
        %v961 = vunpack.c.l.b16 %v667
        %v962 = vunpack.c.h.b16 %v667
        %v963 = vunpack.c.l.b16 %v668
        %v964 = vunpack.c.h.b16 %v668
        %v965 = vunpack.c.l.b16 %v669
        %v966 = vunpack.c.h.b16 %v669
        %v967 = vunpack.c.l.b16 %v670
        %v968 = vunpack.c.h.b16 %v670
        %v969 = vunpack.c.l.b16 %v671
        %v970 = vunpack.c.h.b16 %v671
        %v971 = vunpack.c.l.b16 %v672
        %v972 = vunpack.c.h.b16 %v672
        %v973 = vunpack.c.l.b16 %v673
        %v974 = vunpack.c.h.b16 %v673
        %v975 = vunpack.c.l.b16 %v674
        %v976 = vunpack.c.h.b16 %v674
        %v977 = vunpack.c.l.b16 %v675
        %v978 = vunpack.c.h.b16 %v675
        %v979 = vunpack.c.l.b16 %v676
        %v980 = vunpack.c.h.b16 %v676
        %v981 = vunpack.c.l.b16 %v677
        %v982 = vunpack.c.h.b16 %v677
        %v983 = vunpack.c.l.b16 %v678
        %v984 = vunpack.c.h.b16 %v678
        %v985 = vunpack.c.l.b16 %v679
        %v986 = vunpack.c.h.b16 %v679
        %v987 = vunpack.c.l.b16 %v680
        %v988 = vunpack.c.h.b16 %v680
        %v989 = vunpack.c.l.b16 %v681
        %v990 = vunpack.c.h.b16 %v681
        %v991 = vunpack.c.l.b16 %v682
        %v992 = vunpack.c.h.b16 %v682
        %v993 = vunpack.c.l.b16 %v683
        %v994 = vunpack.c.h.b16 %v683
        %v995 = vunpack.c.l.b16 %v684
        %v996 = vunpack.c.h.b16 %v684
        %v997 = vunpack.c.l.b16 %v685
        %v998 = vunpack.c.h.b16 %v685
        %v999 = vunpack.c.l.b16 %v686
        %v1000 = vunpack.c.h.b16 %v686
        %v1001 = vunpack.c.l.b16 %v687
        %v1002 = vunpack.c.h.b16 %v687
        %v1003 = vunpack.c.l.b16 %v688
        %v1004 = vunpack.c.h.b16 %v688
        %v1005 = vunpack.c.l.b16 %v689
        %v1006 = vunpack.c.h.b16 %v689
        %v1007 = vunpack.c.l.b16 %v690
        %v1008 = vunpack.c.h.b16 %v690
        %v1009 = vunpack.c.l.b16 %v691
        %v1010 = vunpack.c.h.b16 %v691
        %v1011 = vunpack.c.l.b16 %v692
        %v1012 = vunpack.c.h.b16 %v692
        %v1013 = vunpack.c.l.b16 %v693
        %v1014 = vunpack.c.h.b16 %v693
        %v1015 = vunpack.c.l.b16 %v694
        %v1016 = vunpack.c.h.b16 %v694
        %v1017 = vunpack.c.l.b16 %v695
        %v1018 = vunpack.c.h.b16 %v695
        %v1019 = vunpack.c.l.b16 %v696
        %v1020 = vunpack.c.h.b16 %v696
        %v1021 = vunpack.c.l.b16 %v697
        %v1022 = vunpack.c.h.b16 %v697
        %v1023 = vunpack.c.l.b16 %v698
        %v1024 = vunpack.c.h.b16 %v698
        %v1025 = vunpack.c.l.b16 %v699
        %v1026 = vunpack.c.h.b16 %v699
        %v1027 = vunpack.c.l.b16 %v700
        %v1028 = vunpack.c.h.b16 %v700
        %v1029 = vunpack.c.l.b16 %v701
        %v1030 = vunpack.c.h.b16 %v701
        %v1031 = vunpack.c.l.b16 %v702
        %v1032 = vunpack.c.h.b16 %v702
        %v1033 = vunpack.c.l.b16 %v703
        %v1034 = vunpack.c.h.b16 %v703
        %v1035 = vunpack.c.l.b16 %v704
        %v1036 = vunpack.c.h.b16 %v704
        %v1037 = vunpack.c.l.b16 %v705
        %v1038 = vunpack.c.h.b16 %v705
        %v1039 = vunpack.c.l.b16 %v706
        %v1040 = vunpack.c.h.b16 %v706
        %v1041 = vunpack.c.l.b16 %v707
        %v1042 = vunpack.c.h.b16 %v707
        %v1043 = vunpack.c.l.b16 %v708
        %v1044 = vunpack.c.h.b16 %v708
        %v1045 = vunpack.c.l.b16 %v709
        %v1046 = vunpack.c.h.b16 %v709
        %v1047 = vunpack.c.l.b16 %v710
        %v1048 = vunpack.c.h.b16 %v710
        %v1049 = vunpack.c.l.b16 %v711
        %v1050 = vunpack.c.h.b16 %v711
        %v1051 = vunpack.c.l.b16 %v712
        %v1052 = vunpack.c.h.b16 %v712
        %v1053 = vunpack.c.l.b16 %v713
        %v1054 = vunpack.c.h.b16 %v713
        %v1055 = vunpack.c.l.b16 %v714
        %v1056 = vunpack.c.h.b16 %v714
        %v1057 = vunpack.c.l.b16 %v715
        %v1058 = vunpack.c.h.b16 %v715
        %v1059 = vunpack.c.l.b16 %v716
        %v1060 = vunpack.c.h.b16 %v716
        %v1061 = vunpack.c.l.b16 %v717
        %v1062 = vunpack.c.h.b16 %v717
        %v1063 = vunpack.c.l.b16 %v718
        %v1064 = vunpack.c.h.b16 %v718
        %v1065 = vunpack.c.l.b16 %v719
        %v1066 = vunpack.c.h.b16 %v719
        %v1067 = vunpack.c.l.b16 %v720
        %v1068 = vunpack.c.h.b16 %v720
        %v1069 = vunpack.c.l.b16 %v721
        %v1070 = vunpack.c.h.b16 %v721
        %v1071 = vunpack.c.l.b16 %v722
        %v1072 = vunpack.c.h.b16 %v722
        %v1073 = vunpack.c.l.b16 %v723
        %v1074 = vunpack.c.h.b16 %v723
        %v1075 = vunpack.c.l.b16 %v724
        %v1076 = vunpack.c.h.b16 %v724
        %v1077 = vunpack.c.l.b16 %v725
        %v1078 = vunpack.c.h.b16 %v725
        %v1079 = vunpack.c.l.b16 %v726
        %v1080 = vunpack.c.h.b16 %v726
        %v1081 = vunpack.c.l.b16 %v727
        %v1082 = vunpack.c.h.b16 %v727
        %v1083 = vunpack.c.l.b16 %v728
        %v1084 = vunpack.c.h.b16 %v728
        %v1085 = vunpack.c.l.b16 %v729
        %v1086 = vunpack.c.h.b16 %v729
        %v1087 = vunpack.c.l.b16 %v730
        %v1088 = vunpack.c.h.b16 %v730
        %v1089 = vunpack.c.l.b16 %v731
        %v1090 = vunpack.c.h.b16 %v731
        %v1091 = vunpack.c.l.b16 %v732
        %v1092 = vunpack.c.h.b16 %v732
        %v1093 = vunpack.c.l.b16 %v733
        %v1094 = vunpack.c.h.b16 %v733
        %v1095 = vunpack.c.l.b16 %v734
        %v1096 = vunpack.c.h.b16 %v734
        %v1097 = vunpack.c.l.b16 %v735
        %v1098 = vunpack.c.h.b16 %v735
        %v1099 = vunpack.c.l.b16 %v736
        %v1100 = vunpack.c.h.b16 %v736
        %v1101 = vunpack.c.l.b16 %v737
        %v1102 = vunpack.c.h.b16 %v737
        %v1103 = vunpack.c.l.b16 %v738
        %v1104 = vunpack.c.h.b16 %v738
        %v1105 = vunpack.c.l.b16 %v739
        %v1106 = vunpack.c.h.b16 %v739
        %v1107 = vunpack.c.l.b16 %v740
        %v1108 = vunpack.c.h.b16 %v740
        %v1109 = vunpack.c.l.b16 %v741
        %v1110 = vunpack.c.h.b16 %v741
        %v1111 = vunpack.c.l.b16 %v742
        %v1112 = vunpack.c.h.b16 %v742
        %v1113 = vunpack.c.l.b16 %v743
        %v1114 = vunpack.c.h.b16 %v743
        %v1115 = vunpack.c.l.b16 %v744
        %v1116 = vunpack.c.h.b16 %v744
        %v1117 = vunpack.c.l.b16 %v745
        %v1118 = vunpack.c.h.b16 %v745
        %v1119 = vunpack.c.l.b16 %v746
        %v1120 = vunpack.c.h.b16 %v746
        %v1121 = vunpack.c.l.b16 %v747
        %v1122 = vunpack.c.h.b16 %v747
        %v1123 = vunpack.c.l.b16 %v748
        %v1124 = vunpack.c.h.b16 %v748
        %v1125 = vunpack.c.l.b16 %v749
        %v1126 = vunpack.c.h.b16 %v749
        %v1127 = vunpack.c.l.b16 %v750
        %v1128 = vunpack.c.h.b16 %v750
        %v1129 = vunpack.c.l.b16 %v751
        %v1130 = vunpack.c.h.b16 %v751
        %v1131 = vunpack.c.l.b16 %v752
        %v1132 = vunpack.c.h.b16 %v752
        %v1133 = vunpack.c.l.b16 %v753
        %v1134 = vunpack.c.h.b16 %v753
        %v1135 = vunpack.c.l.b16 %v754
        %v1136 = vunpack.c.h.b16 %v754
        %v1137 = vunpack.c.l.b16 %v755
        %v1138 = vunpack.c.h.b16 %v755
        %v1139 = vunpack.c.l.b16 %v756
        %v1140 = vunpack.c.h.b16 %v756
        %v1141 = vunpack.c.l.b16 %v757
        %v1142 = vunpack.c.h.b16 %v757
        %v1143 = vunpack.c.l.b16 %v758
        %v1144 = vunpack.c.h.b16 %v758
        %v1145 = vunpack.c.l.b16 %v759
        %v1146 = vunpack.c.h.b16 %v759
        %v1147 = vunpack.c.l.b16 %v760
        %v1148 = vunpack.c.h.b16 %v760
        %v1149 = vunpack.c.l.b16 %v761
        %v1150 = vunpack.c.h.b16 %v761
        %v1151 = vunpack.c.l.b16 %v762
        %v1152 = vunpack.c.h.b16 %v762
        %v1153 = vunpack.c.l.b16 %v763
        %v1154 = vunpack.c.h.b16 %v763
        %v1155 = vunpack.c.l.b16 %v764
        %v1156 = vunpack.c.h.b16 %v764
        %v1157 = vunpack.c.l.b16 %v765
        %v1158 = vunpack.c.h.b16 %v765
        %v1159 = vunpack.c.l.b16 %v766
        %v1160 = vunpack.c.h.b16 %v766
        %v1161 = vunpack.c.l.b16 %v767
        %v1162 = vunpack.c.h.b16 %v767
        %v1163 = vunpack.c.l.b16 %v768
        %v1164 = vunpack.c.h.b16 %v768
        %v1165 = vunpack.c.l.b16 %v769
        %v1166 = vunpack.c.h.b16 %v769
        %v1167 = vunpack.c.l.b16 %v770
        %v1168 = vunpack.c.h.b16 %v770
        %v1169 = vunpack.c.l.b16 %v771
        %v1170 = vunpack.c.h.b16 %v771
        %v1171 = vunpack.c.l.b16 %v772
        %v1172 = vunpack.c.h.b16 %v772
        %v1173 = vunpack.c.l.b16 %v773
        %v1174 = vunpack.c.h.b16 %v773
        %v1175 = vunpack.c.l.b16 %v774
        %v1176 = vunpack.c.h.b16 %v774
        %v1177 = vunpack.c.l.b16 %v775
        %v1178 = vunpack.c.h.b16 %v775
        %v1179 = vunpack.c.l.b16 %v776
        %v1180 = vunpack.c.h.b16 %v776
        %v1181 = vunpack.c.l.b16 %v777
        %v1182 = vunpack.c.h.b16 %v777
        %v1183 = vunpack.c.l.b16 %v778
        %v1184 = vunpack.c.h.b16 %v778
        %v1185 = vunpack.c.l.b16 %v779
        %v1186 = vunpack.c.h.b16 %v779
        %v1187 = vunpack.c.l.b16 %v780
        %v1188 = vunpack.c.h.b16 %v780
        %v1189 = vunpack.c.l.b16 %v781
        %v1190 = vunpack.c.h.b16 %v781
        %v1191 = vunpack.c.l.b16 %v782
        %v1192 = vunpack.c.h.b16 %v782
        %v1193 = vunpack.c.l.b16 %v783
        %v1194 = vunpack.c.h.b16 %v783
        %v1195 = vunpack.c.l.b16 %v784
        %v1196 = vunpack.c.h.b16 %v784
        %v1197 = vunpack.c.l.b16 %v785
        %v1198 = vunpack.c.h.b16 %v785
        %v1199 = vunpack.c.l.b16 %v786
        %v1200 = vunpack.c.h.b16 %v786
        %v1201 = vpack.c.b16 %v949, %v945
        %v1202 = vpack.c.b16 %v950, %v946
        %v1203 = vpack.c.b16 %v951, %v947
        %v1204 = vpack.c.b16 %v952, %v948
        %v1205 = vpack.c.b16 %v957, %v953
        %v1206 = vpack.c.b16 %v958, %v954
        %v1207 = vpack.c.b16 %v959, %v955
        %v1208 = vpack.c.b16 %v960, %v956
        %v1209 = vpack.c.b16 %v965, %v961
        %v1210 = vpack.c.b16 %v966, %v962
        %v1211 = vpack.c.b16 %v967, %v963
        %v1212 = vpack.c.b16 %v968, %v964
        %v1213 = vpack.c.b16 %v973, %v969
        %v1214 = vpack.c.b16 %v974, %v970
        %v1215 = vpack.c.b16 %v975, %v971
        %v1216 = vpack.c.b16 %v976, %v972
        %v1217 = vpack.c.b16 %v981, %v977
        %v1218 = vpack.c.b16 %v982, %v978
        %v1219 = vpack.c.b16 %v983, %v979
        %v1220 = vpack.c.b16 %v984, %v980
        %v1221 = vpack.c.b16 %v989, %v985
        %v1222 = vpack.c.b16 %v990, %v986
        %v1223 = vpack.c.b16 %v991, %v987
        %v1224 = vpack.c.b16 %v992, %v988
        %v1225 = vpack.c.b16 %v997, %v993
        %v1226 = vpack.c.b16 %v998, %v994
        %v1227 = vpack.c.b16 %v999, %v995
        %v1228 = vpack.c.b16 %v1000, %v996
        %v1229 = vpack.c.b16 %v1005, %v1001
        %v1230 = vpack.c.b16 %v1006, %v1002
        %v1231 = vpack.c.b16 %v1007, %v1003
        %v1232 = vpack.c.b16 %v1008, %v1004
        %v1233 = vpack.c.b16 %v1013, %v1009
        %v1234 = vpack.c.b16 %v1014, %v1010
        %v1235 = vpack.c.b16 %v1015, %v1011
        %v1236 = vpack.c.b16 %v1016, %v1012
        %v1237 = vpack.c.b16 %v1021, %v1017
        %v1238 = vpack.c.b16 %v1022, %v1018
        %v1239 = vpack.c.b16 %v1023, %v1019
        %v1240 = vpack.c.b16 %v1024, %v1020
        %v1241 = vpack.c.b16 %v1029, %v1025
        %v1242 = vpack.c.b16 %v1030, %v1026
        %v1243 = vpack.c.b16 %v1031, %v1027
        %v1244 = vpack.c.b16 %v1032, %v1028
        %v1245 = vpack.c.b16 %v1037, %v1033
        %v1246 = vpack.c.b16 %v1038, %v1034
        %v1247 = vpack.c.b16 %v1039, %v1035
        %v1248 = vpack.c.b16 %v1040, %v1036
        %v1249 = vpack.c.b16 %v1045, %v1041
        %v1250 = vpack.c.b16 %v1046, %v1042
        %v1251 = vpack.c.b16 %v1047, %v1043
        %v1252 = vpack.c.b16 %v1048, %v1044
        %v1253 = vpack.c.b16 %v1053, %v1049
        %v1254 = vpack.c.b16 %v1054, %v1050
        %v1255 = vpack.c.b16 %v1055, %v1051
        %v1256 = vpack.c.b16 %v1056, %v1052
        %v1257 = vpack.c.b16 %v1061, %v1057
        %v1258 = vpack.c.b16 %v1062, %v1058
        %v1259 = vpack.c.b16 %v1063, %v1059
        %v1260 = vpack.c.b16 %v1064, %v1060
        %v1261 = vpack.c.b16 %v1069, %v1065
        %v1262 = vpack.c.b16 %v1070, %v1066
        %v1263 = vpack.c.b16 %v1071, %v1067
        %v1264 = vpack.c.b16 %v1072, %v1068
        %v1265 = vpack.c.b16 %v1077, %v1073
        %v1266 = vpack.c.b16 %v1078, %v1074
        %v1267 = vpack.c.b16 %v1079, %v1075
        %v1268 = vpack.c.b16 %v1080, %v1076
        %v1269 = vpack.c.b16 %v1085, %v1081
        %v1270 = vpack.c.b16 %v1086, %v1082
        %v1271 = vpack.c.b16 %v1087, %v1083
        %v1272 = vpack.c.b16 %v1088, %v1084
        %v1273 = vpack.c.b16 %v1093, %v1089
        %v1274 = vpack.c.b16 %v1094, %v1090
        %v1275 = vpack.c.b16 %v1095, %v1091
        %v1276 = vpack.c.b16 %v1096, %v1092
        %v1277 = vpack.c.b16 %v1101, %v1097
        %v1278 = vpack.c.b16 %v1102, %v1098
        %v1279 = vpack.c.b16 %v1103, %v1099
        %v1280 = vpack.c.b16 %v1104, %v1100
        %v1281 = vpack.c.b16 %v1109, %v1105
        %v1282 = vpack.c.b16 %v1110, %v1106
        %v1283 = vpack.c.b16 %v1111, %v1107
        %v1284 = vpack.c.b16 %v1112, %v1108
        %v1285 = vpack.c.b16 %v1117, %v1113
        %v1286 = vpack.c.b16 %v1118, %v1114
        %v1287 = vpack.c.b16 %v1119, %v1115
        %v1288 = vpack.c.b16 %v1120, %v1116
        %v1289 = vpack.c.b16 %v1125, %v1121
        %v1290 = vpack.c.b16 %v1126, %v1122
        %v1291 = vpack.c.b16 %v1127, %v1123
        %v1292 = vpack.c.b16 %v1128, %v1124
        %v1293 = vpack.c.b16 %v1133, %v1129
        %v1294 = vpack.c.b16 %v1134, %v1130
        %v1295 = vpack.c.b16 %v1135, %v1131
        %v1296 = vpack.c.b16 %v1136, %v1132
        %v1297 = vpack.c.b16 %v1141, %v1137
        %v1298 = vpack.c.b16 %v1142, %v1138
        %v1299 = vpack.c.b16 %v1143, %v1139
        %v1300 = vpack.c.b16 %v1144, %v1140
        %v1301 = vpack.c.b16 %v1149, %v1145
        %v1302 = vpack.c.b16 %v1150, %v1146
        %v1303 = vpack.c.b16 %v1151, %v1147
        %v1304 = vpack.c.b16 %v1152, %v1148
        %v1305 = vpack.c.b16 %v1157, %v1153
        %v1306 = vpack.c.b16 %v1158, %v1154
        %v1307 = vpack.c.b16 %v1159, %v1155
        %v1308 = vpack.c.b16 %v1160, %v1156
        %v1309 = vpack.c.b16 %v1165, %v1161
        %v1310 = vpack.c.b16 %v1166, %v1162
        %v1311 = vpack.c.b16 %v1167, %v1163
        %v1312 = vpack.c.b16 %v1168, %v1164
        %v1313 = vpack.c.b16 %v1173, %v1169
        %v1314 = vpack.c.b16 %v1174, %v1170
        %v1315 = vpack.c.b16 %v1175, %v1171
        %v1316 = vpack.c.b16 %v1176, %v1172
        %v1317 = vpack.c.b16 %v1181, %v1177
        %v1318 = vpack.c.b16 %v1182, %v1178
        %v1319 = vpack.c.b16 %v1183, %v1179
        %v1320 = vpack.c.b16 %v1184, %v1180
        %v1321 = vpack.c.b16 %v1189, %v1185
        %v1322 = vpack.c.b16 %v1190, %v1186
        %v1323 = vpack.c.b16 %v1191, %v1187
        %v1324 = vpack.c.b16 %v1192, %v1188
        %v1325 = vpack.c.b16 %v1197, %v1193
        %v1326 = vpack.c.b16 %v1198, %v1194
        %v1327 = vpack.c.b16 %v1199, %v1195
        %v1328 = vpack.c.b16 %v1200, %v1196
        %1457 = vmatprep.subr.bf16.mxu0 %v1202
        %1458 = vmatpush1.bf16.msra.mxu0 %v1201
        %1459 = vmatprep.subr.bf16.mxu0 %v1206
        %1460 = vmatpush1.bf16.msra.mxu0 %v1205
        %1461 = vmatprep.subr.bf16.mxu0 %v1210
        %1462 = vmatpush1.bf16.msra.mxu0 %v1209
        %1463 = vmatprep.subr.bf16.mxu0 %v1214
        %1464 = vmatpush1.bf16.msra.mxu0 %v1213
        %1465 = vmatprep.subr.bf16.mxu0 %v1218
        %1466 = vmatpush1.bf16.msra.mxu0 %v1217
        %1467 = vmatprep.subr.bf16.mxu0 %v1222
        %1468 = vmatpush1.bf16.msra.mxu0 %v1221
        %1469 = vmatprep.subr.bf16.mxu0 %v1226
        %1470 = vmatpush1.bf16.msra.mxu0 %v1225
        %1471 = vmatprep.subr.bf16.mxu0 %v1230
        %1472 = vmatpush1.bf16.msra.mxu0 %v1229
        %1473 = vmatprep.subr.bf16.mxu0 %v1234
        %1474 = vmatpush1.bf16.msra.mxu0 %v1233
        %1475 = vmatprep.subr.bf16.mxu0 %v1238
        %1476 = vmatpush1.bf16.msra.mxu0 %v1237
        %1477 = vmatprep.subr.bf16.mxu0 %v1242
        %1478 = vmatpush1.bf16.msra.mxu0 %v1241
        %1479 = vmatprep.subr.bf16.mxu0 %v1246
        %1480 = vmatpush1.bf16.msra.mxu0 %v1245
        %1481 = vmatprep.subr.bf16.mxu0 %v1250
        %1482 = vmatpush1.bf16.msra.mxu0 %v1249
        %1483 = vmatprep.subr.bf16.mxu0 %v1254
        %1484 = vmatpush1.bf16.msra.mxu0 %v1253
        %1485 = vmatprep.subr.bf16.mxu0 %v1258
        %1486 = vmatpush1.bf16.msra.mxu0 %v1257
        %1487 = vmatprep.subr.bf16.mxu0 %v1262
        %1488 = vmatpush1.bf16.msra.mxu0 %v1261
        %1489 = vmatprep.mubr.bf16.mxu0 %v788
        %1490 = vmatmul.mubr.bf16.gmra.mrb[0].mxu0 %v787
        %v1491 = vpop.f32.mrb[0].mxu0
        %v1492 = vadd.f32 %v800, %v1491
        %v1493 = vpop.f32.mrb[0].mxu0
        %v1494 = vadd.f32 %v804, %v1493
        %v1495 = vpop.f32.mrb[0].mxu0
        %v1496 = vadd.f32 %v800, %v1495
        %v1497 = vpop.f32.mrb[0].mxu0
        %v1498 = vadd.f32 %v804, %v1497
        %1499 = vmatprep.mubr.bf16.mxu0 %v792
        %1500 = vmatmul.mubr.bf16.gmra.mrb[0].mxu0 %v791
        %v1501 = vpop.f32.mrb[0].mxu0
        %v1502 = vadd.f32 %v800, %v1501
        %v1503 = vpop.f32.mrb[0].mxu0
        %v1504 = vadd.f32 %v804, %v1503
        %v1505 = vpop.f32.mrb[0].mxu0
        %v1506 = vadd.f32 %v800, %v1505
        %v1507 = vpop.f32.mrb[0].mxu0
        %v1508 = vadd.f32 %v804, %v1507
        %1509 = vdwg.mxu0
        %1510 = vmatprep.subr.bf16.mxu0 %v1266
        %1511 = vmatpush1.bf16.msra.mxu0 %v1265
        %1512 = vmatprep.subr.bf16.mxu0 %v1270
        %1513 = vmatpush1.bf16.msra.mxu0 %v1269
        %1514 = vmatprep.subr.bf16.mxu0 %v1274
        %1515 = vmatpush1.bf16.msra.mxu0 %v1273
        %1516 = vmatprep.subr.bf16.mxu0 %v1278
        %1517 = vmatpush1.bf16.msra.mxu0 %v1277
        %1518 = vmatprep.subr.bf16.mxu0 %v1282
        %1519 = vmatpush1.bf16.msra.mxu0 %v1281
        %1520 = vmatprep.subr.bf16.mxu0 %v1286
        %1521 = vmatpush1.bf16.msra.mxu0 %v1285
        %1522 = vmatprep.subr.bf16.mxu0 %v1290
        %1523 = vmatpush1.bf16.msra.mxu0 %v1289
        %1524 = vmatprep.subr.bf16.mxu0 %v1294
        %1525 = vmatpush1.bf16.msra.mxu0 %v1293
        %1526 = vmatprep.subr.bf16.mxu0 %v1298
        %1527 = vmatpush1.bf16.msra.mxu0 %v1297
        %1528 = vmatprep.subr.bf16.mxu0 %v1302
        %1529 = vmatpush1.bf16.msra.mxu0 %v1301
        %1530 = vmatprep.subr.bf16.mxu0 %v1306
        %1531 = vmatpush1.bf16.msra.mxu0 %v1305
        %1532 = vmatprep.subr.bf16.mxu0 %v1310
        %1533 = vmatpush1.bf16.msra.mxu0 %v1309
        %1534 = vmatprep.subr.bf16.mxu0 %v1314
        %1535 = vmatpush1.bf16.msra.mxu0 %v1313
        %1536 = vmatprep.subr.bf16.mxu0 %v1318
        %1537 = vmatpush1.bf16.msra.mxu0 %v1317
        %1538 = vmatprep.subr.bf16.mxu0 %v1322
        %1539 = vmatpush1.bf16.msra.mxu0 %v1321
        %1540 = vmatprep.subr.bf16.mxu0 %v1326
        %1541 = vmatpush1.bf16.msra.mxu0 %v1325
        %1542 = vmatprep.mubr.bf16.mxu0 %v790
        %1543 = vmatmul.mubr.bf16.gmra.mrb[0].mxu0 %v789
        %v1544 = vpop.f32.mrb[0].mxu0
        %v1545 = vadd.f32 %v1492, %v1544
        %v1546 = vpop.f32.mrb[0].mxu0
        %v1547 = vadd.f32 %v1494, %v1546
        %v1548 = vpop.f32.mrb[0].mxu0
        %v1549 = vadd.f32 %v1496, %v1548
        %v1550 = vpop.f32.mrb[0].mxu0
        %v1551 = vadd.f32 %v1498, %v1550
        %1552 = vmatprep.mubr.bf16.mxu0 %v794
        %1553 = vmatmul.mubr.bf16.gmra.mrb[0].mxu0 %v793
        %v1554 = vpop.f32.mrb[0].mxu0
        %v1555 = vadd.f32 %v1502, %v1554
        %v1556 = vpop.f32.mrb[0].mxu0
        %v1557 = vadd.f32 %v1504, %v1556
        %v1558 = vpop.f32.mrb[0].mxu0
        %v1559 = vadd.f32 %v1506, %v1558
        %v1560 = vpop.f32.mrb[0].mxu0
        %v1561 = vadd.f32 %v1508, %v1560
        %1562 = vdwg.mxu0
        %1563 = vmatprep.subr.bf16.mxu0 %v1204
        %1564 = vmatpush1.bf16.msra.mxu0 %v1203
        %1565 = vmatprep.subr.bf16.mxu0 %v1208
        %1566 = vmatpush1.bf16.msra.mxu0 %v1207
        %1567 = vmatprep.subr.bf16.mxu0 %v1212
        %1568 = vmatpush1.bf16.msra.mxu0 %v1211
        %1569 = vmatprep.subr.bf16.mxu0 %v1216
        %1570 = vmatpush1.bf16.msra.mxu0 %v1215
        %1571 = vmatprep.subr.bf16.mxu0 %v1220
        %1572 = vmatpush1.bf16.msra.mxu0 %v1219
        %1573 = vmatprep.subr.bf16.mxu0 %v1224
        %1574 = vmatpush1.bf16.msra.mxu0 %v1223
        %1575 = vmatprep.subr.bf16.mxu0 %v1228
        %1576 = vmatpush1.bf16.msra.mxu0 %v1227
        %1577 = vmatprep.subr.bf16.mxu0 %v1232
        %1578 = vmatpush1.bf16.msra.mxu0 %v1231
        %1579 = vmatprep.subr.bf16.mxu0 %v1236
        %1580 = vmatpush1.bf16.msra.mxu0 %v1235
        %1581 = vmatprep.subr.bf16.mxu0 %v1240
        %1582 = vmatpush1.bf16.msra.mxu0 %v1239
        %1583 = vmatprep.subr.bf16.mxu0 %v1244
        %1584 = vmatpush1.bf16.msra.mxu0 %v1243
        %1585 = vmatprep.subr.bf16.mxu0 %v1248
        %1586 = vmatpush1.bf16.msra.mxu0 %v1247
        %1587 = vmatprep.subr.bf16.mxu0 %v1252
        %1588 = vmatpush1.bf16.msra.mxu0 %v1251
        %1589 = vmatprep.subr.bf16.mxu0 %v1256
        %1590 = vmatpush1.bf16.msra.mxu0 %v1255
        %1591 = vmatprep.subr.bf16.mxu0 %v1260
        %1592 = vmatpush1.bf16.msra.mxu0 %v1259
        %1593 = vmatprep.subr.bf16.mxu0 %v1264
        %1594 = vmatpush1.bf16.msra.mxu0 %v1263
        %1595 = vmatprep.mubr.bf16.mxu0 %v788
        %1596 = vmatmul.mubr.bf16.gmra.mrb[0].mxu0 %v787
        %v1597 = vpop.f32.mrb[0].mxu0
        %v1598 = vadd.f32 %v808, %v1597
        %v1599 = vpop.f32.mrb[0].mxu0
        %v1600 = vadd.f32 %v812, %v1599
        %v1601 = vpop.f32.mrb[0].mxu0
        %v1602 = vadd.f32 %v808, %v1601
        %v1603 = vpop.f32.mrb[0].mxu0
        %v1604 = vadd.f32 %v812, %v1603
        %1605 = vmatprep.mubr.bf16.mxu0 %v792
        %1606 = vmatmul.mubr.bf16.gmra.mrb[0].mxu0 %v791
        %v1607 = vpop.f32.mrb[0].mxu0
        %v1608 = vadd.f32 %v808, %v1607
        %v1609 = vpop.f32.mrb[0].mxu0
        %v1610 = vadd.f32 %v812, %v1609
        %v1611 = vpop.f32.mrb[0].mxu0
        %v1612 = vadd.f32 %v808, %v1611
        %v1613 = vpop.f32.mrb[0].mxu0
        %v1614 = vadd.f32 %v812, %v1613
        %1615 = vdwg.mxu0
        %1616 = vmatprep.subr.bf16.mxu0 %v1268
        %1617 = vmatpush1.bf16.msra.mxu0 %v1267
        %1618 = vmatprep.subr.bf16.mxu0 %v1272
        %1619 = vmatpush1.bf16.msra.mxu0 %v1271
        %1620 = vmatprep.subr.bf16.mxu0 %v1276
        %1621 = vmatpush1.bf16.msra.mxu0 %v1275
        %1622 = vmatprep.subr.bf16.mxu0 %v1280
        %1623 = vmatpush1.bf16.msra.mxu0 %v1279
        %1624 = vmatprep.subr.bf16.mxu0 %v1284
        %1625 = vmatpush1.bf16.msra.mxu0 %v1283
        %1626 = vmatprep.subr.bf16.mxu0 %v1288
        %1627 = vmatpush1.bf16.msra.mxu0 %v1287
        %1628 = vmatprep.subr.bf16.mxu0 %v1292
        %1629 = vmatpush1.bf16.msra.mxu0 %v1291
        %1630 = vmatprep.subr.bf16.mxu0 %v1296
        %1631 = vmatpush1.bf16.msra.mxu0 %v1295
        %1632 = vmatprep.subr.bf16.mxu0 %v1300
        %1633 = vmatpush1.bf16.msra.mxu0 %v1299
        %1634 = vmatprep.subr.bf16.mxu0 %v1304
        %1635 = vmatpush1.bf16.msra.mxu0 %v1303
        %1636 = vmatprep.subr.bf16.mxu0 %v1308
        %1637 = vmatpush1.bf16.msra.mxu0 %v1307
        %1638 = vmatprep.subr.bf16.mxu0 %v1312
        %1639 = vmatpush1.bf16.msra.mxu0 %v1311
        %1640 = vmatprep.subr.bf16.mxu0 %v1316
        %1641 = vmatpush1.bf16.msra.mxu0 %v1315
        %1642 = vmatprep.subr.bf16.mxu0 %v1320
        %1643 = vmatpush1.bf16.msra.mxu0 %v1319
        %1644 = vmatprep.subr.bf16.mxu0 %v1324
        %1645 = vmatpush1.bf16.msra.mxu0 %v1323
        %1646 = vmatprep.subr.bf16.mxu0 %v1328
        %1647 = vmatpush1.bf16.msra.mxu0 %v1327
        %1648 = vmatprep.mubr.bf16.mxu0 %v790
        %1649 = vmatmul.mubr.bf16.gmra.mrb[0].mxu0 %v789
        %v1650 = vpop.f32.mrb[0].mxu0
        %v1651 = vadd.f32 %v1598, %v1650
        %v1652 = vpop.f32.mrb[0].mxu0
        %v1653 = vadd.f32 %v1600, %v1652
        %v1654 = vpop.f32.mrb[0].mxu0
        %v1655 = vadd.f32 %v1602, %v1654
        %v1656 = vpop.f32.mrb[0].mxu0
        %v1657 = vadd.f32 %v1604, %v1656
        %1658 = vmatprep.mubr.bf16.mxu0 %v794
        %1659 = vmatmul.mubr.bf16.gmra.mrb[0].mxu0 %v793
        %v1660 = vpop.f32.mrb[0].mxu0
        %v1661 = vadd.f32 %v1608, %v1660
        %v1662 = vpop.f32.mrb[0].mxu0
        %v1663 = vadd.f32 %v1610, %v1662
        %v1664 = vpop.f32.mrb[0].mxu0
        %v1665 = vadd.f32 %v1612, %v1664
        %v1666 = vpop.f32.mrb[0].mxu0
        %v1667 = vadd.f32 %v1614, %v1666
        %1668 = vdwg.mxu0
        %v1669 = vpack.c.bf16 %v1549, %v1545
        %v1670 = vpack.c.bf16 %v1551, %v1547
        %v1671 = vpack.c.bf16 %v1655, %v1651
        %v1672 = vpack.c.bf16 %v1657, %v1653
        %v1673 = vpack.c.bf16 %v1559, %v1555
        %v1674 = vpack.c.bf16 %v1561, %v1557
        %v1675 = vpack.c.bf16 %v1665, %v1661
        %v1676 = vpack.c.bf16 %v1667, %v1663
        %v1685 = vunpack.c.l.b16 %v1669
        %v1686 = vunpack.c.l.b16 %v1670
        %v1687 = vunpack.c.l.b16 %v1671
        %v1688 = vunpack.c.l.b16 %v1672
        %v1689 = vunpack.c.h.b16 %v1669
        %v1690 = vunpack.c.h.b16 %v1670
        %v1691 = vunpack.c.h.b16 %v1671
        %v1692 = vunpack.c.h.b16 %v1672
        %v1693 = vunpack.c.l.b16 %v1673
        %v1694 = vunpack.c.l.b16 %v1674
        %v1695 = vunpack.c.l.b16 %v1675
        %v1696 = vunpack.c.l.b16 %v1676
        %v1697 = vunpack.c.h.b16 %v1673
        %v1698 = vunpack.c.h.b16 %v1674
        %v1699 = vunpack.c.h.b16 %v1675
        %v1700 = vunpack.c.h.b16 %v1676
        %v1701 = vpack.c.b16 %v1686, %v1685
        %v1702 = vpack.c.b16 %v1688, %v1687
        %v1703 = vpack.c.b16 %v1690, %v1689
        %v1704 = vpack.c.b16 %v1692, %v1691
        %v1705 = vpack.c.b16 %v1694, %v1693
        %v1706 = vpack.c.b16 %v1696, %v1695
        %v1707 = vpack.c.b16 %v1698, %v1697
        %v1708 = vpack.c.b16 %v1700, %v1699
        %1717 = vst [vmem:[%s271] sm:$0xff] %v1701
        %1718 = vst [vmem:[%s271 + $0x8] sm:$0xff] %v1702
        %1719 = vst [vmem:[%s271 + $0x10] sm:$0xff] %v1703
        %1720 = vst [vmem:[%s271 + $0x18] sm:$0xff] %v1704
        %1721 = vst [vmem:[%s271 + $0x20] sm:$0xff] %v1705
        %1722 = vst [vmem:[%s271 + $0x28] sm:$0xff] %v1706
        %1723 = vst [vmem:[%s271 + $0x30] sm:$0xff] %v1707
        %1724 = vst [vmem:[%s271 + $0x38] sm:$0xff] %v1708
        %s1725 = sand.u32 %s141, 1
        %s1726 = scalar_lea.sflag [#allocation4], %s1725
        %s1727 = sand.u32 %s141, 1
        %s1728 = smul.addr %s1727, 64
        %s1729 = scalar_lea.vmem [#allocation8], %s1728
        // Predicated region
        $region53: #{generator_forward.1} parent=39 // pred_check
          %p1730 = pneg %p151
        $region54: #{generator_forward.1} parent=39 // pred_check_branch
          %1732 = sbr.rel (%p1730) target = $region56
        $region55: #{generator_forward.1} parent=39 // pred_region
          %s1733 = smul.u32 4, %s23
          %s1735 = ssub.s32 1024, 1024
          %1736 = vsyncadd %s1726, %s1735
          %s1737 = smul.addr %s1733, 4
          %s1738 = smul.addr %s1737, 64
          %s1739 = scalar_lea.hbm %s5, %s1738
          %s1740 = sshll.u32 %s1729, 4
          %s1741 = int_to_ptr.vmem [resolvable:$true] %s1740
          %1746 = dma.vmem_to_hbm [thread:$0]  %s1741, 1024, %s1739, %s1726, 256, 256, 16
        $region56: #{generator_forward.1} parent=39 // pred_fallthru
          _
      $region40: #{generator_forward.1} parent=5 // pred_fallthru
        _
      %p1747 = scmp.le.s32.totalorder 2, %s18
      // Predicated region
      $region57: #{generator_forward.1} parent=5 // pred_check
        %p1748 = pneg %p1747
      $region58: #{generator_forward.1} parent=5 // pred_check_branch
        %1750 = sbr.rel (%p1748) target = $region60
      $region59: #{generator_forward.1} parent=5 // pred_region
        %s1751 = ssub.s32 %s18, 2
        // Predicated region
        $region61: #{generator_forward.1} parent=59 // pred_check
          %p1752 = pneg %p157
        $region62: #{generator_forward.1} parent=59 // pred_check_branch
          %1754 = sbr.rel (%p1752) target = $region64
        $region63: #{generator_forward.1} parent=59 // pred_region
          %s1755 = sand.u32 %s142, 1
          %s1756 = scalar_lea.sflag [#allocation4], %s1755
          %s1757 = sand.u32 %s142, 1
          %s1758 = smul.addr %s1757, 64
          %s1759 = scalar_lea.vmem [#allocation8], %s1758
          %1760 = dma.done %s1756, 1024
        $region64: #{generator_forward.1} parent=59 // pred_fallthru
          _
      $region60: #{generator_forward.1} parent=5 // pred_fallthru
        _
    $region6: #{generator_forward.1} parent=1 // loop_footer
      %s22 = sadd.s32 1, %s18
    $region7: #{generator_forward.1} parent=1 // loop_footer_branch
      %17 = sbr.rel target = $region3
    $region8: #{generator_forward.1} parent=1 // loop_exit
      _
    %1761 = vsyncpa [#allocation3], 1
    %s1762 = scalar_lea.sflag [#allocation3], 1
    %1763 = vsyncpa %s1762, 1
    %1764 = vsyncpa [#allocation6], 1
    %1765 = vsyncpa [#allocation4], 1
    %s1766 = scalar_lea.sflag [#allocation4], 1
    %1767 = vsyncpa %s1766, 1

</llo_original>
